<compile_context>
chip_gen: v7x
topology: tpu7x:2x2x1
jax: 0.10.0
libtpu: 0.0.40
codegen_flags: <defaults>
</compile_context>

<pallas_src>
import numpy as np
import jax
import jax.numpy as jnp
from jax import lax
from jax.experimental import pallas as pl
from jax.experimental.pallas import tpu as pltpu

# ---- model dims (small, consistent with the module's __init__) --------------
IN_DIM = 4
OUT_DIM = 6
HIDDEN = 32
NUM_LAYERS = 2          # kernel below is written for exactly 2 layers
FEAT = IN_DIM + OUT_DIM
TC = 8                  # time-chunk length == unroll factor of the recurrence


def gru_chunk_kernel(xf_ref, h0_ref, wih0_ref, whhbd_ref, wih1_ref,
                     bi0_ref, bhn0_ref, bi1_ref, bhn1_ref,
                     out_ref, h_sc, gi0_sc):
    H = HIDDEN
    Tc, Np, _ = xf_ref.shape

    # (re)load the initial hidden state at the first time-chunk of a batch tile
    @pl.when(pl.program_id(1) == 0)
    def _():
        h_sc[...] = h0_ref[...]

    # ---------------- hoisted out of the time loop (once per chunk) ----------
    # Layer-0 input projection for the whole chunk: one big MXU matmul.
    # bi0 already contains b_ih0 with (b_hh0) folded in for the r,z gates.
    gi0_sc[...] = (
        jnp.dot(xf_ref[...].reshape(Tc * Np, FEAT), wih0_ref[...],
                preferred_element_type=jnp.float32)
        + bi0_ref[...]
    ).reshape(Tc, Np, 3 * H)

    whh_bd = whhbd_ref[...]                               # (2H, 6H) block-diag
    wih1 = wih1_ref[...]                                  # (H, 3H)
    # broadcast biases once (JAX does not CSE broadcast_in_dim inside loops)
    bi1 = jnp.broadcast_to(bi1_ref[...], (Np, 3 * H))
    bhn0 = jnp.broadcast_to(bhn0_ref[...], (Np, H))
    bhn1 = jnp.broadcast_to(bhn1_ref[...], (Np, H))

    h0 = h_sc[:, :H]
    h1 = h_sc[:, H:]

    # ------------- fully unrolled time recurrence (Tc small & static) --------
    for t in range(Tc):
        # one fused MXU push for both layers' hidden->hidden projections
        hcat = jnp.concatenate([h0, h1], axis=-1)          # (Np, 2H)
        ghh = jnp.dot(hcat, whh_bd, preferred_element_type=jnp.float32)

        # ----- layer 0: gi precomputed, gh = ghh[:, :3H] -----
        gi0 = gi0_sc[t]
        rz0 = jax.nn.sigmoid(gi0[:, :2 * H] + ghh[:, :2 * H])
        n0 = jnp.tanh(gi0[:, 2 * H:] +
                      rz0[:, :H] * (ghh[:, 2 * H:3 * H] + bhn0))
        z0 = rz0[:, H:]
        h0 = (1.0 - z0) * n0 + z0 * h0

        # ----- layer 1: gi depends on fresh h0, gh = ghh[:, 3H:] -----
        gi1 = jnp.dot(h0, wih1, preferred_element_type=jnp.float32) + bi1
        rz1 = jax.nn.sigmoid(gi1[:, :2 * H] + ghh[:, 3 * H:5 * H])
        n1 = jnp.tanh(gi1[:, 2 * H:] +
                      rz1[:, :H] * (ghh[:, 5 * H:] + bhn1))
        z1 = rz1[:, H:]
        h1 = (1.0 - z1) * n1 + z1 * h1

        out_ref[t] = h1          # HIDDEN-wide store; fc/mask happen outside

    # carry hidden state into the next time-chunk of this batch tile
    h_sc[:, :H] = h0
    h_sc[:, H:] = h1


def _round_up(x, m):
    return (x + m - 1) // m * m


def gru_forward(x, y, p):
    """Equivalent of GRU.forward(x, y): x (N, T, in_dim) f32, y (N, T) int."""
    N, T, _ = x.shape
    H = HIDDEN

    # ---- glue (one-hot shift, feature concat) --------------------------------
    y_onehot = jax.nn.one_hot(y, OUT_DIM, dtype=jnp.float32)
    y_onehot_shift = jnp.concatenate(
        [jnp.zeros((N, 1, OUT_DIM), jnp.float32), y_onehot[:, :-1, :]], axis=1)
    xf = jnp.concatenate([x.astype(jnp.float32), y_onehot_shift], axis=-1)

    # ---- padding / tiling -----------------------------------------------------
    n_pad = _round_up(N, 8)                 # fill f32 sublanes
    n_tile = n_pad if n_pad <= 64 else 64   # batch tile for the parallel axis
    n_pad = _round_up(N, n_tile)
    nb = n_pad // n_tile
    t_pad = _round_up(T, TC)
    nc = t_pad // TC

    xf_t = jnp.transpose(xf, (1, 0, 2))                     # (T, N, FEAT)
    xf_t = jnp.pad(xf_t, ((0, t_pad - T), (0, n_pad - N), (0, 0)))

    # ---- fused / pre-combined parameters -------------------------------------
    # block-diagonal hidden->hidden weight: one MXU push covers both layers
    whh_bd = jnp.zeros((2 * H, 6 * H), jnp.float32)
    whh_bd = whh_bd.at[:H, :3 * H].set(p['w_hh0_t'])
    whh_bd = whh_bd.at[H:, 3 * H:].set(p['w_hh1_t'])
    # combined biases: (b_ih + b_hh) for r,z; b_ih alone for n (b_hn stays with gh_n)
    bi0 = jnp.concatenate(
        [p['b_ih0'][:, :2 * H] + p['b_hh0'][:, :2 * H], p['b_ih0'][:, 2 * H:]],
        axis=1)
    bi1 = jnp.concatenate(
        [p['b_ih1'][:, :2 * H] + p['b_hh1'][:, :2 * H], p['b_ih1'][:, 2 * H:]],
        axis=1)
    bhn0 = p['b_hh0'][:, 2 * H:]
    bhn1 = p['b_hh1'][:, 2 * H:]
    h0_cat = jnp.concatenate(
        [jnp.broadcast_to(p['h_init'][0], (n_pad, H)),
         jnp.broadcast_to(p['h_init'][1], (n_pad, H))], axis=-1)

    grid_spec = pltpu.PrefetchScalarGridSpec(
        num_scalar_prefetch=0,
        grid=(nb, nc),
        in_specs=[
            pl.BlockSpec((TC, n_tile, FEAT), lambda b, c: (c, b, 0)),   # xf
            pl.BlockSpec((n_tile, 2 * H), lambda b, c: (b, 0)),         # h0
            pl.BlockSpec((FEAT, 3 * H), lambda b, c: (0, 0)),           # W_ih0
            pl.BlockSpec((2 * H, 6 * H), lambda b, c: (0, 0)),          # W_hh blkdiag
            pl.BlockSpec((H, 3 * H), lambda b, c: (0, 0)),              # W_ih1
            pl.BlockSpec((1, 3 * H), lambda b, c: (0, 0)),              # bi0
            pl.BlockSpec((1, H), lambda b, c: (0, 0)),                  # bhn0
            pl.BlockSpec((1, 3 * H), lambda b, c: (0, 0)),              # bi1
            pl.BlockSpec((1, H), lambda b, c: (0, 0)),                  # bhn1
        ],
        out_specs=pl.BlockSpec((TC, n_tile, HIDDEN), lambda b, c: (c, b, 0)),
        scratch_shapes=[
            pltpu.VMEM((n_tile, 2 * H), jnp.float32),        # hidden carry
            pltpu.VMEM((TC, n_tile, 3 * H), jnp.float32),    # hoisted layer-0 gi
        ],
    )

    z_t = pl.pallas_call(
        gru_chunk_kernel,
        out_shape=jax.ShapeDtypeStruct((t_pad, n_pad, HIDDEN), jnp.float32),
        grid_spec=grid_spec,
        compiler_params=pltpu.CompilerParams(
            dimension_semantics=("parallel", "arbitrary"),
            vmem_limit_bytes=32 * 1024 * 1024),
    )(xf_t, h0_cat, p['w_ih0_t'], whh_bd, p['w_ih1_t'],
      bi0, bhn0, bi1, bhn1)

    # ---- fc / ReLU / mask: parallel over (N, T) -> wrapper-side --------------
    z = jnp.transpose(z_t[:T, :N, :], (1, 0, 2))             # (N, T, HIDDEN)
    logits = jnp.maximum(z, 0.0) @ p['w_fc_t'] + p['b_fc']
    seen = jnp.cumsum(y_onehot_shift, axis=1) > 0            # == cummax(one-hot)
    mask = ~seen
    mask_shift = jnp.concatenate(
        [jnp.zeros((N, T, 1), bool), mask[:, :, :-1]], axis=-1)
    # max_clusters is None in this configuration
    return jnp.where(mask_shift, -jnp.inf, logits)


# ---------------- pure-JAX reference (same math, lax.scan) -------------------
def gru_forward_ref(x, y, p):
    N, T, _ = x.shape
    y_onehot = jax.nn.one_hot(y, OUT_DIM, dtype=jnp.float32)
    y_onehot_shift = jnp.concatenate(
        [jnp.zeros((N, 1, OUT_DIM), jnp.float32), y_onehot[:, :-1, :]], axis=1)
    xf = jnp.concatenate([x.astype(jnp.float32), y_onehot_shift], axis=-1)
    h0 = jnp.broadcast_to(p['h_init'], (NUM_LAYERS, N, HIDDEN)).astype(jnp.float32)

    def cell(x_t, h, wih_t, whh_t, bih, bhh):
        H = HIDDEN
        gi = x_t @ wih_t + bih
        gh = h @ whh_t + bhh
        r = jax.nn.sigmoid(gi[:, :H] + gh[:, :H])
        zg = jax.nn.sigmoid(gi[:, H:2 * H] + gh[:, H:2 * H])
        n = jnp.tanh(gi[:, 2 * H:] + r * gh[:, 2 * H:])
        return (1 - zg) * n + zg * h

    def step(carry, x_t):
        h0l, h1l = carry
        h0n = cell(x_t, h0l, p['w_ih0_t'], p['w_hh0_t'], p['b_ih0'], p['b_hh0'])
        h1n = cell(h0n, h1l, p['w_ih1_t'], p['w_hh1_t'], p['b_ih1'], p['b_hh1'])
        return (h0n, h1n), h1n

    _, zs = lax.scan(step, (h0[0], h0[1]), jnp.transpose(xf, (1, 0, 2)))
    z = jnp.transpose(zs, (1, 0, 2))
    logits = jnp.maximum(z, 0.0) @ p['w_fc_t'] + p['b_fc']
    seen = jnp.cumsum(y_onehot_shift, axis=1) > 0
    mask = ~seen
    mask_shift = jnp.concatenate(
        [jnp.zeros((N, T, 1), bool), mask[:, :, :-1]], axis=-1)
    return jnp.where(mask_shift, -jnp.inf, logits)


# ---------------- deterministic parameter init -------------------------------
def init_params(key):
    ks = jax.random.split(key, 11)
    s = 1.0 / np.sqrt(HIDDEN)

    def u(k, shape):
        return jax.random.uniform(k, shape, jnp.float32, -s, s)

    return {
        # GRU weights, pre-transposed to (in_features, 3*HIDDEN); gate order r,z,n
        'w_ih0_t': u(ks[0], (FEAT, 3 * HIDDEN)),
        'w_hh0_t': u(ks[1], (HIDDEN, 3 * HIDDEN)),
        'b_ih0':   u(ks[2], (1, 3 * HIDDEN)),
        'b_hh0':   u(ks[3], (1, 3 * HIDDEN)),
        'w_ih1_t': u(ks[4], (HIDDEN, 3 * HIDDEN)),
        'w_hh1_t': u(ks[5], (HIDDEN, 3 * HIDDEN)),
        'b_ih1':   u(ks[6], (1, 3 * HIDDEN)),
        'b_hh1':   u(ks[7], (1, 3 * HIDDEN)),
        # fc: (HIDDEN, OUT_DIM) pre-transposed, bias (1, OUT_DIM)
        'w_fc_t':  u(ks[8], (HIDDEN, OUT_DIM)),
        'b_fc':    u(ks[9], (1, OUT_DIM)),
        # h_init ~ 0.01 * randn(num_layers, 1, hidden)
        'h_init':  0.01 * jax.random.normal(ks[10], (NUM_LAYERS, 1, HIDDEN),
                                            jnp.float32),
    }


if __name__ == "__main__":
    key = jax.random.PRNGKey(0)
    kx, ky, kp = jax.random.split(key, 3)
    N, T = 2, 8
    x = jax.random.normal(kx, (N, T, IN_DIM), jnp.float32)
    y = jax.random.randint(ky, (N, T), 0, OUT_DIM, dtype=jnp.int32)
    params = init_params(kp)

    out = jax.block_until_ready(gru_forward(x, y, params))
    ref = jax.block_until_ready(gru_forward_ref(x, y, params))

    assert out.shape == (N, T, OUT_DIM)
    np.testing.assert_allclose(np.asarray(out), np.asarray(ref),
                               rtol=1e-4, atol=1e-4)
    print("KERNEL_OK")
</pallas_src>

<mosaic_0001>
module attributes {stable_mosaic.version = 11 : i64} {
  func.func @gru_chunk_kernel(%arg0: i32, %arg1: i32, %arg2: memref<8x8x10xf32, #tpu.memory_space<vmem>>, %arg3: memref<8x64xf32, #tpu.memory_space<vmem>>, %arg4: memref<10x96xf32, #tpu.memory_space<vmem>>, %arg5: memref<64x192xf32, #tpu.memory_space<vmem>>, %arg6: memref<32x96xf32, #tpu.memory_space<vmem>>, %arg7: memref<1x96xf32, #tpu.memory_space<vmem>>, %arg8: memref<1x32xf32, #tpu.memory_space<vmem>>, %arg9: memref<1x96xf32, #tpu.memory_space<vmem>>, %arg10: memref<1x32xf32, #tpu.memory_space<vmem>>, %arg11: memref<8x8x32xf32, #tpu.memory_space<vmem>>, %arg12: memref<8x64xf32, #tpu.memory_space<vmem>>, %arg13: memref<8x8x96xf32, #tpu.memory_space<vmem>>) attributes {dimension_semantics = [#tpu.dimension_semantics<parallel>, #tpu.dimension_semantics<arbitrary>], iteration_bounds = array<i64: 1, 1>, scalar_prefetch = 0 : i64, scratch_operands = 2 : i64, tpu.core_type = #tpu.core_type<tc>, window_params = [{transform_indices = @transform_0, window_bounds = array<i64: 8, 8, 10>}, {transform_indices = @transform_1, window_bounds = array<i64: 8, 64>}, {pipeline_mode = #tpu.pipeline_mode<synchronous>, transform_indices = @transform_2, window_bounds = array<i64: 10, 96>}, {pipeline_mode = #tpu.pipeline_mode<synchronous>, transform_indices = @transform_3, window_bounds = array<i64: 64, 192>}, {pipeline_mode = #tpu.pipeline_mode<synchronous>, transform_indices = @transform_4, window_bounds = array<i64: 32, 96>}, {pipeline_mode = #tpu.pipeline_mode<synchronous>, transform_indices = @transform_5, window_bounds = array<i64: 1, 96>}, {pipeline_mode = #tpu.pipeline_mode<synchronous>, transform_indices = @transform_6, window_bounds = array<i64: 1, 32>}, {pipeline_mode = #tpu.pipeline_mode<synchronous>, transform_indices = @transform_7, window_bounds = array<i64: 1, 96>}, {pipeline_mode = #tpu.pipeline_mode<synchronous>, transform_indices = @transform_8, window_bounds = array<i64: 1, 32>}, {transform_indices = @transform_9, window_bounds = array<i64: 8, 8, 32>}]} {
    %c0_i32 = arith.constant 0 : i32
    %0 = arith.cmpi eq, %arg1, %c0_i32 : i32
    %1 = arith.extui %0 : i1 to i32
    %c0_i32_0 = arith.constant 0 : i32
    %2 = arith.cmpi ne, %1, %c0_i32_0 : i32
    scf.if %2 {
      %c0_116 = arith.constant 0 : index
      %c0_117 = arith.constant 0 : index
      %435 = vector.load %arg3[%c0_116, %c0_117] : memref<8x64xf32, #tpu.memory_space<vmem>>, vector<8x64xf32>
      %c0_118 = arith.constant 0 : index
      %c0_119 = arith.constant 0 : index
      %436 = vector.load %arg12[%c0_118, %c0_119] : memref<8x64xf32, #tpu.memory_space<vmem>>, vector<8x64xf32>
      tpu.vector_store %arg12[%c0_118, %c0_119], %435 {strides = array<i32>} : memref<8x64xf32, #tpu.memory_space<vmem>>, vector<8x64xf32>,
    } else {
    }
    %c0 = arith.constant 0 : index
    %c0_1 = arith.constant 0 : index
    %c0_2 = arith.constant 0 : index
    %3 = vector.load %arg2[%c0, %c0_1, %c0_2] : memref<8x8x10xf32, #tpu.memory_space<vmem>>, vector<8x8x10xf32>
    %4 = vector.shape_cast %3 : vector<8x8x10xf32> to vector<64x10xf32>
    %c0_3 = arith.constant 0 : index
    %c0_4 = arith.constant 0 : index
    %5 = vector.load %arg4[%c0_3, %c0_4] : memref<10x96xf32, #tpu.memory_space<vmem>>, vector<10x96xf32>
    %cst = arith.constant dense<0.000000e+00> : vector<64x96xf32>
    %6 = tpu.matmul %4, %5, %cst {dimension_numbers = #tpu.dot_dimension_numbers<[1], [0], [0], [1], [0, 0, 1, 1], [], []>} : vector<64x10xf32>, vector<10x96xf32>, vector<64x96xf32> -> vector<64x96xf32>
    %c0_5 = arith.constant 0 : index
    %c0_6 = arith.constant 0 : index
    %7 = vector.load %arg7[%c0_5, %c0_6] : memref<1x96xf32, #tpu.memory_space<vmem>>, vector<1x96xf32>
    %8 = vector.broadcast %7 : vector<1x96xf32> to vector<64x96xf32>
    %9 = arith.addf %6, %8 : vector<64x96xf32>
    %10 = vector.shape_cast %9 : vector<64x96xf32> to vector<8x8x96xf32>
    %c0_7 = arith.constant 0 : index
    %c0_8 = arith.constant 0 : index
    %c0_9 = arith.constant 0 : index
    %11 = vector.load %arg13[%c0_7, %c0_8, %c0_9] : memref<8x8x96xf32, #tpu.memory_space<vmem>>, vector<8x8x96xf32>
    tpu.vector_store %arg13[%c0_7, %c0_8, %c0_9], %10 {strides = array<i32>} : memref<8x8x96xf32, #tpu.memory_space<vmem>>, vector<8x8x96xf32>,
    %c0_10 = arith.constant 0 : index
    %c0_11 = arith.constant 0 : index
    %12 = vector.load %arg5[%c0_10, %c0_11] : memref<64x192xf32, #tpu.memory_space<vmem>>, vector<64x192xf32>
    %c0_12 = arith.constant 0 : index
    %c0_13 = arith.constant 0 : index
    %13 = vector.load %arg6[%c0_12, %c0_13] : memref<32x96xf32, #tpu.memory_space<vmem>>, vector<32x96xf32>
    %c0_14 = arith.constant 0 : index
    %c0_15 = arith.constant 0 : index
    %14 = vector.load %arg9[%c0_14, %c0_15] : memref<1x96xf32, #tpu.memory_space<vmem>>, vector<1x96xf32>
    %15 = vector.shape_cast %14 : vector<1x96xf32> to vector<1x96xf32>
    %16 = vector.broadcast %15 : vector<1x96xf32> to vector<8x96xf32>
    %c0_16 = arith.constant 0 : index
    %c0_17 = arith.constant 0 : index
    %17 = vector.load %arg8[%c0_16, %c0_17] : memref<1x32xf32, #tpu.memory_space<vmem>>, vector<1x32xf32>
    %18 = vector.shape_cast %17 : vector<1x32xf32> to vector<1x32xf32>
    %19 = vector.broadcast %18 : vector<1x32xf32> to vector<8x32xf32>
    %c0_18 = arith.constant 0 : index
    %c0_19 = arith.constant 0 : index
    %20 = vector.load %arg10[%c0_18, %c0_19] : memref<1x32xf32, #tpu.memory_space<vmem>>, vector<1x32xf32>
    %21 = vector.shape_cast %20 : vector<1x32xf32> to vector<1x32xf32>
    %22 = vector.broadcast %21 : vector<1x32xf32> to vector<8x32xf32>
    %c0_20 = arith.constant 0 : index
    %c0_21 = arith.constant 0 : index
    %23 = vector.load %arg12[%c0_20, %c0_21] : memref<8x64xf32, #tpu.memory_space<vmem>>, vector<8x32xf32>
    %c0_22 = arith.constant 0 : index
    %c32 = arith.constant 32 : index
    %24 = vector.load %arg12[%c0_22, %c32] : memref<8x64xf32, #tpu.memory_space<vmem>>, vector<8x32xf32>
    %25 = tpu.concatenate %23, %24 in 1 : vector<8x32xf32>, vector<8x32xf32> -> vector<8x64xf32>
    %cst_23 = arith.constant dense<0.000000e+00> : vector<8x192xf32>
    %26 = tpu.matmul %25, %12, %cst_23 {dimension_numbers = #tpu.dot_dimension_numbers<[1], [0], [0], [1], [0, 0, 1, 1], [], []>} : vector<8x64xf32>, vector<64x192xf32>, vector<8x192xf32> -> vector<8x192xf32>
    %c0_24 = arith.constant 0 : index
    %c0_25 = arith.constant 0 : index
    %c0_26 = arith.constant 0 : index
    %27 = vector.load %arg13[%c0_24, %c0_25, %c0_26] : memref<8x8x96xf32, #tpu.memory_space<vmem>>, vector<1x8x96xf32>
    %28 = vector.shape_cast %27 : vector<1x8x96xf32> to vector<8x96xf32>
    %29 = vector.extract_strided_slice %28 {offsets = [0, 0], sizes = [8, 64], strides = [1, 1]} : vector<8x96xf32> to vector<8x64xf32>
    %30 = vector.extract_strided_slice %26 {offsets = [0, 0], sizes = [8, 64], strides = [1, 1]} : vector<8x192xf32> to vector<8x64xf32>
    %31 = arith.addf %29, %30 : vector<8x64xf32>
    %32 = arith.negf %31 : vector<8x64xf32>
    %33 = math.exp %32 : vector<8x64xf32>
    %cst_27 = arith.constant 1.000000e+00 : f32
    %34 = vector.broadcast %cst_27 : f32 to vector<8x64xf32>
    %35 = arith.addf %34, %33 : vector<8x64xf32>
    %36 = arith.divf %34, %35 : vector<8x64xf32>
    %37 = vector.extract_strided_slice %28 {offsets = [0, 64], sizes = [8, 32], strides = [1, 1]} : vector<8x96xf32> to vector<8x32xf32>
    %38 = vector.extract_strided_slice %36 {offsets = [0, 0], sizes = [8, 32], strides = [1, 1]} : vector<8x64xf32> to vector<8x32xf32>
    %39 = vector.extract_strided_slice %26 {offsets = [0, 64], sizes = [8, 32], strides = [1, 1]} : vector<8x192xf32> to vector<8x32xf32>
    %40 = arith.addf %39, %19 : vector<8x32xf32>
    %41 = arith.mulf %38, %40 : vector<8x32xf32>
    %42 = arith.addf %37, %41 : vector<8x32xf32>
    %43 = math.tanh %42 : vector<8x32xf32>
    %44 = vector.extract_strided_slice %36 {offsets = [0, 32], sizes = [8, 32], strides = [1, 1]} : vector<8x64xf32> to vector<8x32xf32>
    %cst_28 = arith.constant 1.000000e+00 : f32
    %45 = vector.broadcast %cst_28 : f32 to vector<8x32xf32>
    %46 = arith.subf %45, %44 : vector<8x32xf32>
    %47 = arith.mulf %46, %43 : vector<8x32xf32>
    %48 = arith.mulf %44, %23 : vector<8x32xf32>
    %49 = arith.addf %47, %48 : vector<8x32xf32>
    %cst_29 = arith.constant dense<0.000000e+00> : vector<8x96xf32>
    %50 = tpu.matmul %49, %13, %cst_29 {dimension_numbers = #tpu.dot_dimension_numbers<[1], [0], [0], [1], [0, 0, 1, 1], [], []>} : vector<8x32xf32>, vector<32x96xf32>, vector<8x96xf32> -> vector<8x96xf32>
    %51 = arith.addf %50, %16 : vector<8x96xf32>
    %52 = vector.extract_strided_slice %51 {offsets = [0, 0], sizes = [8, 64], strides = [1, 1]} : vector<8x96xf32> to vector<8x64xf32>
    %53 = vector.extract_strided_slice %26 {offsets = [0, 96], sizes = [8, 64], strides = [1, 1]} : vector<8x192xf32> to vector<8x64xf32>
    %54 = arith.addf %52, %53 : vector<8x64xf32>
    %55 = arith.negf %54 : vector<8x64xf32>
    %56 = math.exp %55 : vector<8x64xf32>
    %cst_30 = arith.constant 1.000000e+00 : f32
    %57 = vector.broadcast %cst_30 : f32 to vector<8x64xf32>
    %58 = arith.addf %57, %56 : vector<8x64xf32>
    %59 = arith.divf %57, %58 : vector<8x64xf32>
    %60 = vector.extract_strided_slice %51 {offsets = [0, 64], sizes = [8, 32], strides = [1, 1]} : vector<8x96xf32> to vector<8x32xf32>
    %61 = vector.extract_strided_slice %59 {offsets = [0, 0], sizes = [8, 32], strides = [1, 1]} : vector<8x64xf32> to vector<8x32xf32>
    %62 = vector.extract_strided_slice %26 {offsets = [0, 160], sizes = [8, 32], strides = [1, 1]} : vector<8x192xf32> to vector<8x32xf32>
    %63 = arith.addf %62, %22 : vector<8x32xf32>
    %64 = arith.mulf %61, %63 : vector<8x32xf32>
    %65 = arith.addf %60, %64 : vector<8x32xf32>
    %66 = math.tanh %65 : vector<8x32xf32>
    %67 = vector.extract_strided_slice %59 {offsets = [0, 32], sizes = [8, 32], strides = [1, 1]} : vector<8x64xf32> to vector<8x32xf32>
    %cst_31 = arith.constant 1.000000e+00 : f32
    %68 = vector.broadcast %cst_31 : f32 to vector<8x32xf32>
    %69 = arith.subf %68, %67 : vector<8x32xf32>
    %70 = arith.mulf %69, %66 : vector<8x32xf32>
    %71 = arith.mulf %67, %24 : vector<8x32xf32>
    %72 = arith.addf %70, %71 : vector<8x32xf32>
    %c0_32 = arith.constant 0 : index
    %c0_33 = arith.constant 0 : index
    %c0_34 = arith.constant 0 : index
    %73 = vector.load %arg11[%c0_32, %c0_33, %c0_34] : memref<8x8x32xf32, #tpu.memory_space<vmem>>, vector<1x8x32xf32>
    %74 = vector.shape_cast %73 : vector<1x8x32xf32> to vector<8x32xf32>
    %75 = vector.shape_cast %72 : vector<8x32xf32> to vector<1x8x32xf32>
    tpu.vector_store %arg11[%c0_32, %c0_33, %c0_34], %75 {strides = array<i32>} : memref<8x8x32xf32, #tpu.memory_space<vmem>>, vector<1x8x32xf32>,
    %76 = tpu.concatenate %49, %72 in 1 : vector<8x32xf32>, vector<8x32xf32> -> vector<8x64xf32>
    %cst_35 = arith.constant dense<0.000000e+00> : vector<8x192xf32>
    %77 = tpu.matmul %76, %12, %cst_35 {dimension_numbers = #tpu.dot_dimension_numbers<[1], [0], [0], [1], [0, 0, 1, 1], [], []>} : vector<8x64xf32>, vector<64x192xf32>, vector<8x192xf32> -> vector<8x192xf32>
    %c1 = arith.constant 1 : index
    %c0_36 = arith.constant 0 : index
    %c0_37 = arith.constant 0 : index
    %78 = vector.load %arg13[%c1, %c0_36, %c0_37] : memref<8x8x96xf32, #tpu.memory_space<vmem>>, vector<1x8x96xf32>
    %79 = vector.shape_cast %78 : vector<1x8x96xf32> to vector<8x96xf32>
    %80 = vector.extract_strided_slice %79 {offsets = [0, 0], sizes = [8, 64], strides = [1, 1]} : vector<8x96xf32> to vector<8x64xf32>
    %81 = vector.extract_strided_slice %77 {offsets = [0, 0], sizes = [8, 64], strides = [1, 1]} : vector<8x192xf32> to vector<8x64xf32>
    %82 = arith.addf %80, %81 : vector<8x64xf32>
    %83 = arith.negf %82 : vector<8x64xf32>
    %84 = math.exp %83 : vector<8x64xf32>
    %cst_38 = arith.constant 1.000000e+00 : f32
    %85 = vector.broadcast %cst_38 : f32 to vector<8x64xf32>
    %86 = arith.addf %85, %84 : vector<8x64xf32>
    %87 = arith.divf %85, %86 : vector<8x64xf32>
    %88 = vector.extract_strided_slice %79 {offsets = [0, 64], sizes = [8, 32], strides = [1, 1]} : vector<8x96xf32> to vector<8x32xf32>
    %89 = vector.extract_strided_slice %87 {offsets = [0, 0], sizes = [8, 32], strides = [1, 1]} : vector<8x64xf32> to vector<8x32xf32>
    %90 = vector.extract_strided_slice %77 {offsets = [0, 64], sizes = [8, 32], strides = [1, 1]} : vector<8x192xf32> to vector<8x32xf32>
    %91 = arith.addf %90, %19 : vector<8x32xf32>
    %92 = arith.mulf %89, %91 : vector<8x32xf32>
    %93 = arith.addf %88, %92 : vector<8x32xf32>
    %94 = math.tanh %93 : vector<8x32xf32>
    %95 = vector.extract_strided_slice %87 {offsets = [0, 32], sizes = [8, 32], strides = [1, 1]} : vector<8x64xf32> to vector<8x32xf32>
    %cst_39 = arith.constant 1.000000e+00 : f32
    %96 = vector.broadcast %cst_39 : f32 to vector<8x32xf32>
    %97 = arith.subf %96, %95 : vector<8x32xf32>
    %98 = arith.mulf %97, %94 : vector<8x32xf32>
    %99 = arith.mulf %95, %49 : vector<8x32xf32>
    %100 = arith.addf %98, %99 : vector<8x32xf32>
    %cst_40 = arith.constant dense<0.000000e+00> : vector<8x96xf32>
    %101 = tpu.matmul %100, %13, %cst_40 {dimension_numbers = #tpu.dot_dimension_numbers<[1], [0], [0], [1], [0, 0, 1, 1], [], []>} : vector<8x32xf32>, vector<32x96xf32>, vector<8x96xf32> -> vector<8x96xf32>
    %102 = arith.addf %101, %16 : vector<8x96xf32>
    %103 = vector.extract_strided_slice %102 {offsets = [0, 0], sizes = [8, 64], strides = [1, 1]} : vector<8x96xf32> to vector<8x64xf32>
    %104 = vector.extract_strided_slice %77 {offsets = [0, 96], sizes = [8, 64], strides = [1, 1]} : vector<8x192xf32> to vector<8x64xf32>
    %105 = arith.addf %103, %104 : vector<8x64xf32>
    %106 = arith.negf %105 : vector<8x64xf32>
    %107 = math.exp %106 : vector<8x64xf32>
    %cst_41 = arith.constant 1.000000e+00 : f32
    %108 = vector.broadcast %cst_41 : f32 to vector<8x64xf32>
    %109 = arith.addf %108, %107 : vector<8x64xf32>
    %110 = arith.divf %108, %109 : vector<8x64xf32>
    %111 = vector.extract_strided_slice %102 {offsets = [0, 64], sizes = [8, 32], strides = [1, 1]} : vector<8x96xf32> to vector<8x32xf32>
    %112 = vector.extract_strided_slice %110 {offsets = [0, 0], sizes = [8, 32], strides = [1, 1]} : vector<8x64xf32> to vector<8x32xf32>
    %113 = vector.extract_strided_slice %77 {offsets = [0, 160], sizes = [8, 32], strides = [1, 1]} : vector<8x192xf32> to vector<8x32xf32>
    %114 = arith.addf %113, %22 : vector<8x32xf32>
    %115 = arith.mulf %112, %114 : vector<8x32xf32>
    %116 = arith.addf %111, %115 : vector<8x32xf32>
    %117 = math.tanh %116 : vector<8x32xf32>
    %118 = vector.extract_strided_slice %110 {offsets = [0, 32], sizes = [8, 32], strides = [1, 1]} : vector<8x64xf32> to vector<8x32xf32>
    %cst_42 = arith.constant 1.000000e+00 : f32
    %119 = vector.broadcast %cst_42 : f32 to vector<8x32xf32>
    %120 = arith.subf %119, %118 : vector<8x32xf32>
    %121 = arith.mulf %120, %117 : vector<8x32xf32>
    %122 = arith.mulf %118, %72 : vector<8x32xf32>
    %123 = arith.addf %121, %122 : vector<8x32xf32>
    %c1_43 = arith.constant 1 : index
    %c0_44 = arith.constant 0 : index
    %c0_45 = arith.constant 0 : index
    %124 = vector.load %arg11[%c1_43, %c0_44, %c0_45] : memref<8x8x32xf32, #tpu.memory_space<vmem>>, vector<1x8x32xf32>
    %125 = vector.shape_cast %124 : vector<1x8x32xf32> to vector<8x32xf32>
    %126 = vector.shape_cast %123 : vector<8x32xf32> to vector<1x8x32xf32>
    tpu.vector_store %arg11[%c1_43, %c0_44, %c0_45], %126 {strides = array<i32>} : memref<8x8x32xf32, #tpu.memory_space<vmem>>, vector<1x8x32xf32>,
    %127 = tpu.concatenate %100, %123 in 1 : vector<8x32xf32>, vector<8x32xf32> -> vector<8x64xf32>
    %cst_46 = arith.constant dense<0.000000e+00> : vector<8x192xf32>
    %128 = tpu.matmul %127, %12, %cst_46 {dimension_numbers = #tpu.dot_dimension_numbers<[1], [0], [0], [1], [0, 0, 1, 1], [], []>} : vector<8x64xf32>, vector<64x192xf32>, vector<8x192xf32> -> vector<8x192xf32>
    %c2 = arith.constant 2 : index
    %c0_47 = arith.constant 0 : index
    %c0_48 = arith.constant 0 : index
    %129 = vector.load %arg13[%c2, %c0_47, %c0_48] : memref<8x8x96xf32, #tpu.memory_space<vmem>>, vector<1x8x96xf32>
    %130 = vector.shape_cast %129 : vector<1x8x96xf32> to vector<8x96xf32>
    %131 = vector.extract_strided_slice %130 {offsets = [0, 0], sizes = [8, 64], strides = [1, 1]} : vector<8x96xf32> to vector<8x64xf32>
    %132 = vector.extract_strided_slice %128 {offsets = [0, 0], sizes = [8, 64], strides = [1, 1]} : vector<8x192xf32> to vector<8x64xf32>
    %133 = arith.addf %131, %132 : vector<8x64xf32>
    %134 = arith.negf %133 : vector<8x64xf32>
    %135 = math.exp %134 : vector<8x64xf32>
    %cst_49 = arith.constant 1.000000e+00 : f32
    %136 = vector.broadcast %cst_49 : f32 to vector<8x64xf32>
    %137 = arith.addf %136, %135 : vector<8x64xf32>
    %138 = arith.divf %136, %137 : vector<8x64xf32>
    %139 = vector.extract_strided_slice %130 {offsets = [0, 64], sizes = [8, 32], strides = [1, 1]} : vector<8x96xf32> to vector<8x32xf32>
    %140 = vector.extract_strided_slice %138 {offsets = [0, 0], sizes = [8, 32], strides = [1, 1]} : vector<8x64xf32> to vector<8x32xf32>
    %141 = vector.extract_strided_slice %128 {offsets = [0, 64], sizes = [8, 32], strides = [1, 1]} : vector<8x192xf32> to vector<8x32xf32>
    %142 = arith.addf %141, %19 : vector<8x32xf32>
    %143 = arith.mulf %140, %142 : vector<8x32xf32>
    %144 = arith.addf %139, %143 : vector<8x32xf32>
    %145 = math.tanh %144 : vector<8x32xf32>
    %146 = vector.extract_strided_slice %138 {offsets = [0, 32], sizes = [8, 32], strides = [1, 1]} : vector<8x64xf32> to vector<8x32xf32>
    %cst_50 = arith.constant 1.000000e+00 : f32
    %147 = vector.broadcast %cst_50 : f32 to vector<8x32xf32>
    %148 = arith.subf %147, %146 : vector<8x32xf32>
    %149 = arith.mulf %148, %145 : vector<8x32xf32>
    %150 = arith.mulf %146, %100 : vector<8x32xf32>
    %151 = arith.addf %149, %150 : vector<8x32xf32>
    %cst_51 = arith.constant dense<0.000000e+00> : vector<8x96xf32>
    %152 = tpu.matmul %151, %13, %cst_51 {dimension_numbers = #tpu.dot_dimension_numbers<[1], [0], [0], [1], [0, 0, 1, 1], [], []>} : vector<8x32xf32>, vector<32x96xf32>, vector<8x96xf32> -> vector<8x96xf32>
    %153 = arith.addf %152, %16 : vector<8x96xf32>
    %154 = vector.extract_strided_slice %153 {offsets = [0, 0], sizes = [8, 64], strides = [1, 1]} : vector<8x96xf32> to vector<8x64xf32>
    %155 = vector.extract_strided_slice %128 {offsets = [0, 96], sizes = [8, 64], strides = [1, 1]} : vector<8x192xf32> to vector<8x64xf32>
    %156 = arith.addf %154, %155 : vector<8x64xf32>
    %157 = arith.negf %156 : vector<8x64xf32>
    %158 = math.exp %157 : vector<8x64xf32>
    %cst_52 = arith.constant 1.000000e+00 : f32
    %159 = vector.broadcast %cst_52 : f32 to vector<8x64xf32>
    %160 = arith.addf %159, %158 : vector<8x64xf32>
    %161 = arith.divf %159, %160 : vector<8x64xf32>
    %162 = vector.extract_strided_slice %153 {offsets = [0, 64], sizes = [8, 32], strides = [1, 1]} : vector<8x96xf32> to vector<8x32xf32>
    %163 = vector.extract_strided_slice %161 {offsets = [0, 0], sizes = [8, 32], strides = [1, 1]} : vector<8x64xf32> to vector<8x32xf32>
    %164 = vector.extract_strided_slice %128 {offsets = [0, 160], sizes = [8, 32], strides = [1, 1]} : vector<8x192xf32> to vector<8x32xf32>
    %165 = arith.addf %164, %22 : vector<8x32xf32>
    %166 = arith.mulf %163, %165 : vector<8x32xf32>
    %167 = arith.addf %162, %166 : vector<8x32xf32>
    %168 = math.tanh %167 : vector<8x32xf32>
    %169 = vector.extract_strided_slice %161 {offsets = [0, 32], sizes = [8, 32], strides = [1, 1]} : vector<8x64xf32> to vector<8x32xf32>
    %cst_53 = arith.constant 1.000000e+00 : f32
    %170 = vector.broadcast %cst_53 : f32 to vector<8x32xf32>
    %171 = arith.subf %170, %169 : vector<8x32xf32>
    %172 = arith.mulf %171, %168 : vector<8x32xf32>
    %173 = arith.mulf %169, %123 : vector<8x32xf32>
    %174 = arith.addf %172, %173 : vector<8x32xf32>
    %c2_54 = arith.constant 2 : index
    %c0_55 = arith.constant 0 : index
    %c0_56 = arith.constant 0 : index
    %175 = vector.load %arg11[%c2_54, %c0_55, %c0_56] : memref<8x8x32xf32, #tpu.memory_space<vmem>>, vector<1x8x32xf32>
    %176 = vector.shape_cast %175 : vector<1x8x32xf32> to vector<8x32xf32>
    %177 = vector.shape_cast %174 : vector<8x32xf32> to vector<1x8x32xf32>
    tpu.vector_store %arg11[%c2_54, %c0_55, %c0_56], %177 {strides = array<i32>} : memref<8x8x32xf32, #tpu.memory_space<vmem>>, vector<1x8x32xf32>,
    %178 = tpu.concatenate %151, %174 in 1 : vector<8x32xf32>, vector<8x32xf32> -> vector<8x64xf32>
    %cst_57 = arith.constant dense<0.000000e+00> : vector<8x192xf32>
    %179 = tpu.matmul %178, %12, %cst_57 {dimension_numbers = #tpu.dot_dimension_numbers<[1], [0], [0], [1], [0, 0, 1, 1], [], []>} : vector<8x64xf32>, vector<64x192xf32>, vector<8x192xf32> -> vector<8x192xf32>
    %c3 = arith.constant 3 : index
    %c0_58 = arith.constant 0 : index
    %c0_59 = arith.constant 0 : index
    %180 = vector.load %arg13[%c3, %c0_58, %c0_59] : memref<8x8x96xf32, #tpu.memory_space<vmem>>, vector<1x8x96xf32>
    %181 = vector.shape_cast %180 : vector<1x8x96xf32> to vector<8x96xf32>
    %182 = vector.extract_strided_slice %181 {offsets = [0, 0], sizes = [8, 64], strides = [1, 1]} : vector<8x96xf32> to vector<8x64xf32>
    %183 = vector.extract_strided_slice %179 {offsets = [0, 0], sizes = [8, 64], strides = [1, 1]} : vector<8x192xf32> to vector<8x64xf32>
    %184 = arith.addf %182, %183 : vector<8x64xf32>
    %185 = arith.negf %184 : vector<8x64xf32>
    %186 = math.exp %185 : vector<8x64xf32>
    %cst_60 = arith.constant 1.000000e+00 : f32
    %187 = vector.broadcast %cst_60 : f32 to vector<8x64xf32>
    %188 = arith.addf %187, %186 : vector<8x64xf32>
    %189 = arith.divf %187, %188 : vector<8x64xf32>
    %190 = vector.extract_strided_slice %181 {offsets = [0, 64], sizes = [8, 32], strides = [1, 1]} : vector<8x96xf32> to vector<8x32xf32>
    %191 = vector.extract_strided_slice %189 {offsets = [0, 0], sizes = [8, 32], strides = [1, 1]} : vector<8x64xf32> to vector<8x32xf32>
    %192 = vector.extract_strided_slice %179 {offsets = [0, 64], sizes = [8, 32], strides = [1, 1]} : vector<8x192xf32> to vector<8x32xf32>
    %193 = arith.addf %192, %19 : vector<8x32xf32>
    %194 = arith.mulf %191, %193 : vector<8x32xf32>
    %195 = arith.addf %190, %194 : vector<8x32xf32>
    %196 = math.tanh %195 : vector<8x32xf32>
    %197 = vector.extract_strided_slice %189 {offsets = [0, 32], sizes = [8, 32], strides = [1, 1]} : vector<8x64xf32> to vector<8x32xf32>
    %cst_61 = arith.constant 1.000000e+00 : f32
    %198 = vector.broadcast %cst_61 : f32 to vector<8x32xf32>
    %199 = arith.subf %198, %197 : vector<8x32xf32>
    %200 = arith.mulf %199, %196 : vector<8x32xf32>
    %201 = arith.mulf %197, %151 : vector<8x32xf32>
    %202 = arith.addf %200, %201 : vector<8x32xf32>
    %cst_62 = arith.constant dense<0.000000e+00> : vector<8x96xf32>
    %203 = tpu.matmul %202, %13, %cst_62 {dimension_numbers = #tpu.dot_dimension_numbers<[1], [0], [0], [1], [0, 0, 1, 1], [], []>} : vector<8x32xf32>, vector<32x96xf32>, vector<8x96xf32> -> vector<8x96xf32>
    %204 = arith.addf %203, %16 : vector<8x96xf32>
    %205 = vector.extract_strided_slice %204 {offsets = [0, 0], sizes = [8, 64], strides = [1, 1]} : vector<8x96xf32> to vector<8x64xf32>
    %206 = vector.extract_strided_slice %179 {offsets = [0, 96], sizes = [8, 64], strides = [1, 1]} : vector<8x192xf32> to vector<8x64xf32>
    %207 = arith.addf %205, %206 : vector<8x64xf32>
    %208 = arith.negf %207 : vector<8x64xf32>
    %209 = math.exp %208 : vector<8x64xf32>
    %cst_63 = arith.constant 1.000000e+00 : f32
    %210 = vector.broadcast %cst_63 : f32 to vector<8x64xf32>
    %211 = arith.addf %210, %209 : vector<8x64xf32>
    %212 = arith.divf %210, %211 : vector<8x64xf32>
    %213 = vector.extract_strided_slice %204 {offsets = [0, 64], sizes = [8, 32], strides = [1, 1]} : vector<8x96xf32> to vector<8x32xf32>
    %214 = vector.extract_strided_slice %212 {offsets = [0, 0], sizes = [8, 32], strides = [1, 1]} : vector<8x64xf32> to vector<8x32xf32>
    %215 = vector.extract_strided_slice %179 {offsets = [0, 160], sizes = [8, 32], strides = [1, 1]} : vector<8x192xf32> to vector<8x32xf32>
    %216 = arith.addf %215, %22 : vector<8x32xf32>
    %217 = arith.mulf %214, %216 : vector<8x32xf32>
    %218 = arith.addf %213, %217 : vector<8x32xf32>
    %219 = math.tanh %218 : vector<8x32xf32>
    %220 = vector.extract_strided_slice %212 {offsets = [0, 32], sizes = [8, 32], strides = [1, 1]} : vector<8x64xf32> to vector<8x32xf32>
    %cst_64 = arith.constant 1.000000e+00 : f32
    %221 = vector.broadcast %cst_64 : f32 to vector<8x32xf32>
    %222 = arith.subf %221, %220 : vector<8x32xf32>
    %223 = arith.mulf %222, %219 : vector<8x32xf32>
    %224 = arith.mulf %220, %174 : vector<8x32xf32>
    %225 = arith.addf %223, %224 : vector<8x32xf32>
    %c3_65 = arith.constant 3 : index
    %c0_66 = arith.constant 0 : index
    %c0_67 = arith.constant 0 : index
    %226 = vector.load %arg11[%c3_65, %c0_66, %c0_67] : memref<8x8x32xf32, #tpu.memory_space<vmem>>, vector<1x8x32xf32>
    %227 = vector.shape_cast %226 : vector<1x8x32xf32> to vector<8x32xf32>
    %228 = vector.shape_cast %225 : vector<8x32xf32> to vector<1x8x32xf32>
    tpu.vector_store %arg11[%c3_65, %c0_66, %c0_67], %228 {strides = array<i32>} : memref<8x8x32xf32, #tpu.memory_space<vmem>>, vector<1x8x32xf32>,
    %229 = tpu.concatenate %202, %225 in 1 : vector<8x32xf32>, vector<8x32xf32> -> vector<8x64xf32>
    %cst_68 = arith.constant dense<0.000000e+00> : vector<8x192xf32>
    %230 = tpu.matmul %229, %12, %cst_68 {dimension_numbers = #tpu.dot_dimension_numbers<[1], [0], [0], [1], [0, 0, 1, 1], [], []>} : vector<8x64xf32>, vector<64x192xf32>, vector<8x192xf32> -> vector<8x192xf32>
    %c4 = arith.constant 4 : index
    %c0_69 = arith.constant 0 : index
    %c0_70 = arith.constant 0 : index
    %231 = vector.load %arg13[%c4, %c0_69, %c0_70] : memref<8x8x96xf32, #tpu.memory_space<vmem>>, vector<1x8x96xf32>
    %232 = vector.shape_cast %231 : vector<1x8x96xf32> to vector<8x96xf32>
    %233 = vector.extract_strided_slice %232 {offsets = [0, 0], sizes = [8, 64], strides = [1, 1]} : vector<8x96xf32> to vector<8x64xf32>
    %234 = vector.extract_strided_slice %230 {offsets = [0, 0], sizes = [8, 64], strides = [1, 1]} : vector<8x192xf32> to vector<8x64xf32>
    %235 = arith.addf %233, %234 : vector<8x64xf32>
    %236 = arith.negf %235 : vector<8x64xf32>
    %237 = math.exp %236 : vector<8x64xf32>
    %cst_71 = arith.constant 1.000000e+00 : f32
    %238 = vector.broadcast %cst_71 : f32 to vector<8x64xf32>
    %239 = arith.addf %238, %237 : vector<8x64xf32>
    %240 = arith.divf %238, %239 : vector<8x64xf32>
    %241 = vector.extract_strided_slice %232 {offsets = [0, 64], sizes = [8, 32], strides = [1, 1]} : vector<8x96xf32> to vector<8x32xf32>
    %242 = vector.extract_strided_slice %240 {offsets = [0, 0], sizes = [8, 32], strides = [1, 1]} : vector<8x64xf32> to vector<8x32xf32>
    %243 = vector.extract_strided_slice %230 {offsets = [0, 64], sizes = [8, 32], strides = [1, 1]} : vector<8x192xf32> to vector<8x32xf32>
    %244 = arith.addf %243, %19 : vector<8x32xf32>
    %245 = arith.mulf %242, %244 : vector<8x32xf32>
    %246 = arith.addf %241, %245 : vector<8x32xf32>
    %247 = math.tanh %246 : vector<8x32xf32>
    %248 = vector.extract_strided_slice %240 {offsets = [0, 32], sizes = [8, 32], strides = [1, 1]} : vector<8x64xf32> to vector<8x32xf32>
    %cst_72 = arith.constant 1.000000e+00 : f32
    %249 = vector.broadcast %cst_72 : f32 to vector<8x32xf32>
    %250 = arith.subf %249, %248 : vector<8x32xf32>
    %251 = arith.mulf %250, %247 : vector<8x32xf32>
    %252 = arith.mulf %248, %202 : vector<8x32xf32>
    %253 = arith.addf %251, %252 : vector<8x32xf32>
    %cst_73 = arith.constant dense<0.000000e+00> : vector<8x96xf32>
    %254 = tpu.matmul %253, %13, %cst_73 {dimension_numbers = #tpu.dot_dimension_numbers<[1], [0], [0], [1], [0, 0, 1, 1], [], []>} : vector<8x32xf32>, vector<32x96xf32>, vector<8x96xf32> -> vector<8x96xf32>
    %255 = arith.addf %254, %16 : vector<8x96xf32>
    %256 = vector.extract_strided_slice %255 {offsets = [0, 0], sizes = [8, 64], strides = [1, 1]} : vector<8x96xf32> to vector<8x64xf32>
    %257 = vector.extract_strided_slice %230 {offsets = [0, 96], sizes = [8, 64], strides = [1, 1]} : vector<8x192xf32> to vector<8x64xf32>
    %258 = arith.addf %256, %257 : vector<8x64xf32>
    %259 = arith.negf %258 : vector<8x64xf32>
    %260 = math.exp %259 : vector<8x64xf32>
    %cst_74 = arith.constant 1.000000e+00 : f32
    %261 = vector.broadcast %cst_74 : f32 to vector<8x64xf32>
    %262 = arith.addf %261, %260 : vector<8x64xf32>
    %263 = arith.divf %261, %262 : vector<8x64xf32>
    %264 = vector.extract_strided_slice %255 {offsets = [0, 64], sizes = [8, 32], strides = [1, 1]} : vector<8x96xf32> to vector<8x32xf32>
    %265 = vector.extract_strided_slice %263 {offsets = [0, 0], sizes = [8, 32], strides = [1, 1]} : vector<8x64xf32> to vector<8x32xf32>
    %266 = vector.extract_strided_slice %230 {offsets = [0, 160], sizes = [8, 32], strides = [1, 1]} : vector<8x192xf32> to vector<8x32xf32>
    %267 = arith.addf %266, %22 : vector<8x32xf32>
    %268 = arith.mulf %265, %267 : vector<8x32xf32>
    %269 = arith.addf %264, %268 : vector<8x32xf32>
    %270 = math.tanh %269 : vector<8x32xf32>
    %271 = vector.extract_strided_slice %263 {offsets = [0, 32], sizes = [8, 32], strides = [1, 1]} : vector<8x64xf32> to vector<8x32xf32>
    %cst_75 = arith.constant 1.000000e+00 : f32
    %272 = vector.broadcast %cst_75 : f32 to vector<8x32xf32>
    %273 = arith.subf %272, %271 : vector<8x32xf32>
    %274 = arith.mulf %273, %270 : vector<8x32xf32>
    %275 = arith.mulf %271, %225 : vector<8x32xf32>
    %276 = arith.addf %274, %275 : vector<8x32xf32>
    %c4_76 = arith.constant 4 : index
    %c0_77 = arith.constant 0 : index
    %c0_78 = arith.constant 0 : index
    %277 = vector.load %arg11[%c4_76, %c0_77, %c0_78] : memref<8x8x32xf32, #tpu.memory_space<vmem>>, vector<1x8x32xf32>
    %278 = vector.shape_cast %277 : vector<1x8x32xf32> to vector<8x32xf32>
    %279 = vector.shape_cast %276 : vector<8x32xf32> to vector<1x8x32xf32>
    tpu.vector_store %arg11[%c4_76, %c0_77, %c0_78], %279 {strides = array<i32>} : memref<8x8x32xf32, #tpu.memory_space<vmem>>, vector<1x8x32xf32>,
    %280 = tpu.concatenate %253, %276 in 1 : vector<8x32xf32>, vector<8x32xf32> -> vector<8x64xf32>
    %cst_79 = arith.constant dense<0.000000e+00> : vector<8x192xf32>
    %281 = tpu.matmul %280, %12, %cst_79 {dimension_numbers = #tpu.dot_dimension_numbers<[1], [0], [0], [1], [0, 0, 1, 1], [], []>} : vector<8x64xf32>, vector<64x192xf32>, vector<8x192xf32> -> vector<8x192xf32>
    %c5 = arith.constant 5 : index
    %c0_80 = arith.constant 0 : index
    %c0_81 = arith.constant 0 : index
    %282 = vector.load %arg13[%c5, %c0_80, %c0_81] : memref<8x8x96xf32, #tpu.memory_space<vmem>>, vector<1x8x96xf32>
    %283 = vector.shape_cast %282 : vector<1x8x96xf32> to vector<8x96xf32>
    %284 = vector.extract_strided_slice %283 {offsets = [0, 0], sizes = [8, 64], strides = [1, 1]} : vector<8x96xf32> to vector<8x64xf32>
    %285 = vector.extract_strided_slice %281 {offsets = [0, 0], sizes = [8, 64], strides = [1, 1]} : vector<8x192xf32> to vector<8x64xf32>
    %286 = arith.addf %284, %285 : vector<8x64xf32>
    %287 = arith.negf %286 : vector<8x64xf32>
    %288 = math.exp %287 : vector<8x64xf32>
    %cst_82 = arith.constant 1.000000e+00 : f32
    %289 = vector.broadcast %cst_82 : f32 to vector<8x64xf32>
    %290 = arith.addf %289, %288 : vector<8x64xf32>
    %291 = arith.divf %289, %290 : vector<8x64xf32>
    %292 = vector.extract_strided_slice %283 {offsets = [0, 64], sizes = [8, 32], strides = [1, 1]} : vector<8x96xf32> to vector<8x32xf32>
    %293 = vector.extract_strided_slice %291 {offsets = [0, 0], sizes = [8, 32], strides = [1, 1]} : vector<8x64xf32> to vector<8x32xf32>
    %294 = vector.extract_strided_slice %281 {offsets = [0, 64], sizes = [8, 32], strides = [1, 1]} : vector<8x192xf32> to vector<8x32xf32>
    %295 = arith.addf %294, %19 : vector<8x32xf32>
    %296 = arith.mulf %293, %295 : vector<8x32xf32>
    %297 = arith.addf %292, %296 : vector<8x32xf32>
    %298 = math.tanh %297 : vector<8x32xf32>
    %299 = vector.extract_strided_slice %291 {offsets = [0, 32], sizes = [8, 32], strides = [1, 1]} : vector<8x64xf32> to vector<8x32xf32>
    %cst_83 = arith.constant 1.000000e+00 : f32
    %300 = vector.broadcast %cst_83 : f32 to vector<8x32xf32>
    %301 = arith.subf %300, %299 : vector<8x32xf32>
    %302 = arith.mulf %301, %298 : vector<8x32xf32>
    %303 = arith.mulf %299, %253 : vector<8x32xf32>
    %304 = arith.addf %302, %303 : vector<8x32xf32>
    %cst_84 = arith.constant dense<0.000000e+00> : vector<8x96xf32>
    %305 = tpu.matmul %304, %13, %cst_84 {dimension_numbers = #tpu.dot_dimension_numbers<[1], [0], [0], [1], [0, 0, 1, 1], [], []>} : vector<8x32xf32>, vector<32x96xf32>, vector<8x96xf32> -> vector<8x96xf32>
    %306 = arith.addf %305, %16 : vector<8x96xf32>
    %307 = vector.extract_strided_slice %306 {offsets = [0, 0], sizes = [8, 64], strides = [1, 1]} : vector<8x96xf32> to vector<8x64xf32>
    %308 = vector.extract_strided_slice %281 {offsets = [0, 96], sizes = [8, 64], strides = [1, 1]} : vector<8x192xf32> to vector<8x64xf32>
    %309 = arith.addf %307, %308 : vector<8x64xf32>
    %310 = arith.negf %309 : vector<8x64xf32>
    %311 = math.exp %310 : vector<8x64xf32>
    %cst_85 = arith.constant 1.000000e+00 : f32
    %312 = vector.broadcast %cst_85 : f32 to vector<8x64xf32>
    %313 = arith.addf %312, %311 : vector<8x64xf32>
    %314 = arith.divf %312, %313 : vector<8x64xf32>
    %315 = vector.extract_strided_slice %306 {offsets = [0, 64], sizes = [8, 32], strides = [1, 1]} : vector<8x96xf32> to vector<8x32xf32>
    %316 = vector.extract_strided_slice %314 {offsets = [0, 0], sizes = [8, 32], strides = [1, 1]} : vector<8x64xf32> to vector<8x32xf32>
    %317 = vector.extract_strided_slice %281 {offsets = [0, 160], sizes = [8, 32], strides = [1, 1]} : vector<8x192xf32> to vector<8x32xf32>
    %318 = arith.addf %317, %22 : vector<8x32xf32>
    %319 = arith.mulf %316, %318 : vector<8x32xf32>
    %320 = arith.addf %315, %319 : vector<8x32xf32>
    %321 = math.tanh %320 : vector<8x32xf32>
    %322 = vector.extract_strided_slice %314 {offsets = [0, 32], sizes = [8, 32], strides = [1, 1]} : vector<8x64xf32> to vector<8x32xf32>
    %cst_86 = arith.constant 1.000000e+00 : f32
    %323 = vector.broadcast %cst_86 : f32 to vector<8x32xf32>
    %324 = arith.subf %323, %322 : vector<8x32xf32>
    %325 = arith.mulf %324, %321 : vector<8x32xf32>
    %326 = arith.mulf %322, %276 : vector<8x32xf32>
    %327 = arith.addf %325, %326 : vector<8x32xf32>
    %c5_87 = arith.constant 5 : index
    %c0_88 = arith.constant 0 : index
    %c0_89 = arith.constant 0 : index
    %328 = vector.load %arg11[%c5_87, %c0_88, %c0_89] : memref<8x8x32xf32, #tpu.memory_space<vmem>>, vector<1x8x32xf32>
    %329 = vector.shape_cast %328 : vector<1x8x32xf32> to vector<8x32xf32>
    %330 = vector.shape_cast %327 : vector<8x32xf32> to vector<1x8x32xf32>
    tpu.vector_store %arg11[%c5_87, %c0_88, %c0_89], %330 {strides = array<i32>} : memref<8x8x32xf32, #tpu.memory_space<vmem>>, vector<1x8x32xf32>,
    %331 = tpu.concatenate %304, %327 in 1 : vector<8x32xf32>, vector<8x32xf32> -> vector<8x64xf32>
    %cst_90 = arith.constant dense<0.000000e+00> : vector<8x192xf32>
    %332 = tpu.matmul %331, %12, %cst_90 {dimension_numbers = #tpu.dot_dimension_numbers<[1], [0], [0], [1], [0, 0, 1, 1], [], []>} : vector<8x64xf32>, vector<64x192xf32>, vector<8x192xf32> -> vector<8x192xf32>
    %c6 = arith.constant 6 : index
    %c0_91 = arith.constant 0 : index
    %c0_92 = arith.constant 0 : index
    %333 = vector.load %arg13[%c6, %c0_91, %c0_92] : memref<8x8x96xf32, #tpu.memory_space<vmem>>, vector<1x8x96xf32>
    %334 = vector.shape_cast %333 : vector<1x8x96xf32> to vector<8x96xf32>
    %335 = vector.extract_strided_slice %334 {offsets = [0, 0], sizes = [8, 64], strides = [1, 1]} : vector<8x96xf32> to vector<8x64xf32>
    %336 = vector.extract_strided_slice %332 {offsets = [0, 0], sizes = [8, 64], strides = [1, 1]} : vector<8x192xf32> to vector<8x64xf32>
    %337 = arith.addf %335, %336 : vector<8x64xf32>
    %338 = arith.negf %337 : vector<8x64xf32>
    %339 = math.exp %338 : vector<8x64xf32>
    %cst_93 = arith.constant 1.000000e+00 : f32
    %340 = vector.broadcast %cst_93 : f32 to vector<8x64xf32>
    %341 = arith.addf %340, %339 : vector<8x64xf32>
    %342 = arith.divf %340, %341 : vector<8x64xf32>
    %343 = vector.extract_strided_slice %334 {offsets = [0, 64], sizes = [8, 32], strides = [1, 1]} : vector<8x96xf32> to vector<8x32xf32>
    %344 = vector.extract_strided_slice %342 {offsets = [0, 0], sizes = [8, 32], strides = [1, 1]} : vector<8x64xf32> to vector<8x32xf32>
    %345 = vector.extract_strided_slice %332 {offsets = [0, 64], sizes = [8, 32], strides = [1, 1]} : vector<8x192xf32> to vector<8x32xf32>
    %346 = arith.addf %345, %19 : vector<8x32xf32>
    %347 = arith.mulf %344, %346 : vector<8x32xf32>
    %348 = arith.addf %343, %347 : vector<8x32xf32>
    %349 = math.tanh %348 : vector<8x32xf32>
    %350 = vector.extract_strided_slice %342 {offsets = [0, 32], sizes = [8, 32], strides = [1, 1]} : vector<8x64xf32> to vector<8x32xf32>
    %cst_94 = arith.constant 1.000000e+00 : f32
    %351 = vector.broadcast %cst_94 : f32 to vector<8x32xf32>
    %352 = arith.subf %351, %350 : vector<8x32xf32>
    %353 = arith.mulf %352, %349 : vector<8x32xf32>
    %354 = arith.mulf %350, %304 : vector<8x32xf32>
    %355 = arith.addf %353, %354 : vector<8x32xf32>
    %cst_95 = arith.constant dense<0.000000e+00> : vector<8x96xf32>
    %356 = tpu.matmul %355, %13, %cst_95 {dimension_numbers = #tpu.dot_dimension_numbers<[1], [0], [0], [1], [0, 0, 1, 1], [], []>} : vector<8x32xf32>, vector<32x96xf32>, vector<8x96xf32> -> vector<8x96xf32>
    %357 = arith.addf %356, %16 : vector<8x96xf32>
    %358 = vector.extract_strided_slice %357 {offsets = [0, 0], sizes = [8, 64], strides = [1, 1]} : vector<8x96xf32> to vector<8x64xf32>
    %359 = vector.extract_strided_slice %332 {offsets = [0, 96], sizes = [8, 64], strides = [1, 1]} : vector<8x192xf32> to vector<8x64xf32>
    %360 = arith.addf %358, %359 : vector<8x64xf32>
    %361 = arith.negf %360 : vector<8x64xf32>
    %362 = math.exp %361 : vector<8x64xf32>
    %cst_96 = arith.constant 1.000000e+00 : f32
    %363 = vector.broadcast %cst_96 : f32 to vector<8x64xf32>
    %364 = arith.addf %363, %362 : vector<8x64xf32>
    %365 = arith.divf %363, %364 : vector<8x64xf32>
    %366 = vector.extract_strided_slice %357 {offsets = [0, 64], sizes = [8, 32], strides = [1, 1]} : vector<8x96xf32> to vector<8x32xf32>
    %367 = vector.extract_strided_slice %365 {offsets = [0, 0], sizes = [8, 32], strides = [1, 1]} : vector<8x64xf32> to vector<8x32xf32>
    %368 = vector.extract_strided_slice %332 {offsets = [0, 160], sizes = [8, 32], strides = [1, 1]} : vector<8x192xf32> to vector<8x32xf32>
    %369 = arith.addf %368, %22 : vector<8x32xf32>
    %370 = arith.mulf %367, %369 : vector<8x32xf32>
    %371 = arith.addf %366, %370 : vector<8x32xf32>
    %372 = math.tanh %371 : vector<8x32xf32>
    %373 = vector.extract_strided_slice %365 {offsets = [0, 32], sizes = [8, 32], strides = [1, 1]} : vector<8x64xf32> to vector<8x32xf32>
    %cst_97 = arith.constant 1.000000e+00 : f32
    %374 = vector.broadcast %cst_97 : f32 to vector<8x32xf32>
    %375 = arith.subf %374, %373 : vector<8x32xf32>
    %376 = arith.mulf %375, %372 : vector<8x32xf32>
    %377 = arith.mulf %373, %327 : vector<8x32xf32>
    %378 = arith.addf %376, %377 : vector<8x32xf32>
    %c6_98 = arith.constant 6 : index
    %c0_99 = arith.constant 0 : index
    %c0_100 = arith.constant 0 : index
    %379 = vector.load %arg11[%c6_98, %c0_99, %c0_100] : memref<8x8x32xf32, #tpu.memory_space<vmem>>, vector<1x8x32xf32>
    %380 = vector.shape_cast %379 : vector<1x8x32xf32> to vector<8x32xf32>
    %381 = vector.shape_cast %378 : vector<8x32xf32> to vector<1x8x32xf32>
    tpu.vector_store %arg11[%c6_98, %c0_99, %c0_100], %381 {strides = array<i32>} : memref<8x8x32xf32, #tpu.memory_space<vmem>>, vector<1x8x32xf32>,
    %382 = tpu.concatenate %355, %378 in 1 : vector<8x32xf32>, vector<8x32xf32> -> vector<8x64xf32>
    %cst_101 = arith.constant dense<0.000000e+00> : vector<8x192xf32>
    %383 = tpu.matmul %382, %12, %cst_101 {dimension_numbers = #tpu.dot_dimension_numbers<[1], [0], [0], [1], [0, 0, 1, 1], [], []>} : vector<8x64xf32>, vector<64x192xf32>, vector<8x192xf32> -> vector<8x192xf32>
    %c7 = arith.constant 7 : index
    %c0_102 = arith.constant 0 : index
    %c0_103 = arith.constant 0 : index
    %384 = vector.load %arg13[%c7, %c0_102, %c0_103] : memref<8x8x96xf32, #tpu.memory_space<vmem>>, vector<1x8x96xf32>
    %385 = vector.shape_cast %384 : vector<1x8x96xf32> to vector<8x96xf32>
    %386 = vector.extract_strided_slice %385 {offsets = [0, 0], sizes = [8, 64], strides = [1, 1]} : vector<8x96xf32> to vector<8x64xf32>
    %387 = vector.extract_strided_slice %383 {offsets = [0, 0], sizes = [8, 64], strides = [1, 1]} : vector<8x192xf32> to vector<8x64xf32>
    %388 = arith.addf %386, %387 : vector<8x64xf32>
    %389 = arith.negf %388 : vector<8x64xf32>
    %390 = math.exp %389 : vector<8x64xf32>
    %cst_104 = arith.constant 1.000000e+00 : f32
    %391 = vector.broadcast %cst_104 : f32 to vector<8x64xf32>
    %392 = arith.addf %391, %390 : vector<8x64xf32>
    %393 = arith.divf %391, %392 : vector<8x64xf32>
    %394 = vector.extract_strided_slice %385 {offsets = [0, 64], sizes = [8, 32], strides = [1, 1]} : vector<8x96xf32> to vector<8x32xf32>
    %395 = vector.extract_strided_slice %393 {offsets = [0, 0], sizes = [8, 32], strides = [1, 1]} : vector<8x64xf32> to vector<8x32xf32>
    %396 = vector.extract_strided_slice %383 {offsets = [0, 64], sizes = [8, 32], strides = [1, 1]} : vector<8x192xf32> to vector<8x32xf32>
    %397 = arith.addf %396, %19 : vector<8x32xf32>
    %398 = arith.mulf %395, %397 : vector<8x32xf32>
    %399 = arith.addf %394, %398 : vector<8x32xf32>
    %400 = math.tanh %399 : vector<8x32xf32>
    %401 = vector.extract_strided_slice %393 {offsets = [0, 32], sizes = [8, 32], strides = [1, 1]} : vector<8x64xf32> to vector<8x32xf32>
    %cst_105 = arith.constant 1.000000e+00 : f32
    %402 = vector.broadcast %cst_105 : f32 to vector<8x32xf32>
    %403 = arith.subf %402, %401 : vector<8x32xf32>
    %404 = arith.mulf %403, %400 : vector<8x32xf32>
    %405 = arith.mulf %401, %355 : vector<8x32xf32>
    %406 = arith.addf %404, %405 : vector<8x32xf32>
    %cst_106 = arith.constant dense<0.000000e+00> : vector<8x96xf32>
    %407 = tpu.matmul %406, %13, %cst_106 {dimension_numbers = #tpu.dot_dimension_numbers<[1], [0], [0], [1], [0, 0, 1, 1], [], []>} : vector<8x32xf32>, vector<32x96xf32>, vector<8x96xf32> -> vector<8x96xf32>
    %408 = arith.addf %407, %16 : vector<8x96xf32>
    %409 = vector.extract_strided_slice %408 {offsets = [0, 0], sizes = [8, 64], strides = [1, 1]} : vector<8x96xf32> to vector<8x64xf32>
    %410 = vector.extract_strided_slice %383 {offsets = [0, 96], sizes = [8, 64], strides = [1, 1]} : vector<8x192xf32> to vector<8x64xf32>
    %411 = arith.addf %409, %410 : vector<8x64xf32>
    %412 = arith.negf %411 : vector<8x64xf32>
    %413 = math.exp %412 : vector<8x64xf32>
    %cst_107 = arith.constant 1.000000e+00 : f32
    %414 = vector.broadcast %cst_107 : f32 to vector<8x64xf32>
    %415 = arith.addf %414, %413 : vector<8x64xf32>
    %416 = arith.divf %414, %415 : vector<8x64xf32>
    %417 = vector.extract_strided_slice %408 {offsets = [0, 64], sizes = [8, 32], strides = [1, 1]} : vector<8x96xf32> to vector<8x32xf32>
    %418 = vector.extract_strided_slice %416 {offsets = [0, 0], sizes = [8, 32], strides = [1, 1]} : vector<8x64xf32> to vector<8x32xf32>
    %419 = vector.extract_strided_slice %383 {offsets = [0, 160], sizes = [8, 32], strides = [1, 1]} : vector<8x192xf32> to vector<8x32xf32>
    %420 = arith.addf %419, %22 : vector<8x32xf32>
    %421 = arith.mulf %418, %420 : vector<8x32xf32>
    %422 = arith.addf %417, %421 : vector<8x32xf32>
    %423 = math.tanh %422 : vector<8x32xf32>
    %424 = vector.extract_strided_slice %416 {offsets = [0, 32], sizes = [8, 32], strides = [1, 1]} : vector<8x64xf32> to vector<8x32xf32>
    %cst_108 = arith.constant 1.000000e+00 : f32
    %425 = vector.broadcast %cst_108 : f32 to vector<8x32xf32>
    %426 = arith.subf %425, %424 : vector<8x32xf32>
    %427 = arith.mulf %426, %423 : vector<8x32xf32>
    %428 = arith.mulf %424, %378 : vector<8x32xf32>
    %429 = arith.addf %427, %428 : vector<8x32xf32>
    %c7_109 = arith.constant 7 : index
    %c0_110 = arith.constant 0 : index
    %c0_111 = arith.constant 0 : index
    %430 = vector.load %arg11[%c7_109, %c0_110, %c0_111] : memref<8x8x32xf32, #tpu.memory_space<vmem>>, vector<1x8x32xf32>
    %431 = vector.shape_cast %430 : vector<1x8x32xf32> to vector<8x32xf32>
    %432 = vector.shape_cast %429 : vector<8x32xf32> to vector<1x8x32xf32>
    tpu.vector_store %arg11[%c7_109, %c0_110, %c0_111], %432 {strides = array<i32>} : memref<8x8x32xf32, #tpu.memory_space<vmem>>, vector<1x8x32xf32>,
    %c0_112 = arith.constant 0 : index
    %c0_113 = arith.constant 0 : index
    %433 = vector.load %arg12[%c0_112, %c0_113] : memref<8x64xf32, #tpu.memory_space<vmem>>, vector<8x32xf32>
    tpu.vector_store %arg12[%c0_112, %c0_113], %406 {strides = array<i32>} : memref<8x64xf32, #tpu.memory_space<vmem>>, vector<8x32xf32>,
    %c0_114 = arith.constant 0 : index
    %c32_115 = arith.constant 32 : index
    %434 = vector.load %arg12[%c0_114, %c32_115] : memref<8x64xf32, #tpu.memory_space<vmem>>, vector<8x32xf32>
    tpu.vector_store %arg12[%c0_114, %c32_115], %429 {strides = array<i32>} : memref<8x64xf32, #tpu.memory_space<vmem>>, vector<8x32xf32>,
    return
  }
  func.func @transform_0(%arg0: i32, %arg1: i32) -> (i32, i32, i32) {
    %c0_i32 = arith.constant 0 : i32
    %c0_i32_0 = arith.constant 0 : i32
    return %arg1, %arg0, %c0_i32 : i32, i32, i32
  }
  func.func @transform_1(%arg0: i32, %arg1: i32) -> (i32, i32) {
    %c0_i32 = arith.constant 0 : i32
    %c0_i32_0 = arith.constant 0 : i32
    return %arg0, %c0_i32 : i32, i32
  }
  func.func @transform_2(%arg0: i32, %arg1: i32) -> (i32, i32) {
    %c0_i32 = arith.constant 0 : i32
    %c0_i32_0 = arith.constant 0 : i32
    %c0_i32_1 = arith.constant 0 : i32
    return %c0_i32, %c0_i32_0 : i32, i32
  }
  func.func @transform_3(%arg0: i32, %arg1: i32) -> (i32, i32) {
    %c0_i32 = arith.constant 0 : i32
    %c0_i32_0 = arith.constant 0 : i32
    %c0_i32_1 = arith.constant 0 : i32
    return %c0_i32, %c0_i32_0 : i32, i32
  }
  func.func @transform_4(%arg0: i32, %arg1: i32) -> (i32, i32) {
    %c0_i32 = arith.constant 0 : i32
    %c0_i32_0 = arith.constant 0 : i32
    %c0_i32_1 = arith.constant 0 : i32
    return %c0_i32, %c0_i32_0 : i32, i32
  }
  func.func @transform_5(%arg0: i32, %arg1: i32) -> (i32, i32) {
    %c0_i32 = arith.constant 0 : i32
    %c0_i32_0 = arith.constant 0 : i32
    %c0_i32_1 = arith.constant 0 : i32
    return %c0_i32, %c0_i32_0 : i32, i32
  }
  func.func @transform_6(%arg0: i32, %arg1: i32) -> (i32, i32) {
    %c0_i32 = arith.constant 0 : i32
    %c0_i32_0 = arith.constant 0 : i32
    %c0_i32_1 = arith.constant 0 : i32
    return %c0_i32, %c0_i32_0 : i32, i32
  }
  func.func @transform_7(%arg0: i32, %arg1: i32) -> (i32, i32) {
    %c0_i32 = arith.constant 0 : i32
    %c0_i32_0 = arith.constant 0 : i32
    %c0_i32_1 = arith.constant 0 : i32
    return %c0_i32, %c0_i32_0 : i32, i32
  }
  func.func @transform_8(%arg0: i32, %arg1: i32) -> (i32, i32) {
    %c0_i32 = arith.constant 0 : i32
    %c0_i32_0 = arith.constant 0 : i32
    %c0_i32_1 = arith.constant 0 : i32
    return %c0_i32, %c0_i32_0 : i32, i32
  }
  func.func @transform_9(%arg0: i32, %arg1: i32) -> (i32, i32, i32) {
    %c0_i32 = arith.constant 0 : i32
    %c0_i32_0 = arith.constant 0 : i32
    return %arg1, %arg0, %c0_i32 : i32, i32, i32
  }
}

</mosaic_0001>

<llo_original>
// kernel: tpu_custom_call.1
$region0: #{tpu_custom_call.1}
  #allocation0 [shape = 'u32[]', space=smem, size = 0x4, offset = 0x4, fixed_abs, tag = 'smem constant byte address 0x4 - core index']
  #allocation1 [shape = 'u32[144,128]{1,0:T(1,128)}', space=vmem, size = 0x12000, scoped, tag = 'internal scratch']
  #allocation2 [shape = 'f32[8,64]{1,0:T(8,128)}', space=vmem, size = 0x1000, scoped, tag = 'scratch operand']
  #allocation3 [shape = 'f32[8,8,96]{2,1,0:T(8,128)}', space=vmem, size = 0x8000, scoped, tag = 'scratch operand']
  %s0 = inlined_call_operand.hbm [shape: f32[8,8,10], index: 0, kind: input, shape index: {}]
  %s1 = inlined_call_operand.hbm [shape: f32[8,64], index: 1, kind: input, shape index: {}]
  %s2 = inlined_call_operand.hbm [shape: f32[10,96], index: 2, kind: input, shape index: {}]
  %s3 = inlined_call_operand.hbm [shape: f32[64,192], index: 3, kind: input, shape index: {}]
  %s4 = inlined_call_operand.hbm [shape: f32[32,96], index: 4, kind: input, shape index: {}]
  %s5 = inlined_call_operand.vmem [shape: f32[1,96], index: 5, kind: input, shape index: {}]
  %s6 = inlined_call_operand.vmem [shape: f32[1,32], index: 6, kind: input, shape index: {}]
  %s7 = inlined_call_operand.vmem [shape: f32[1,96], index: 7, kind: input, shape index: {}]
  %s8 = inlined_call_operand.vmem [shape: f32[1,32], index: 8, kind: input, shape index: {}]
  %s9 = inlined_call_operand.hbm [shape: f32[8,8,32], index: 9, kind: output, shape index: {}]
  %s10 = sld [smem:[#allocation0]]
  $region70: #{tpu_custom_call.1} parent=0
    _
  %s12 = ssub.s32 1, %s10
  %s13 = scalar_select 0, %s12, %s10
  $region1: #{tpu_custom_call.1} parent=0
    #allocation4 [shape = 'u8[32768]{0}', space=vmem, size = 0x8000, scoped, tag = 'input window, operand 0, single buffered']
    #allocation5 [shape = 's32[1]{0}', space=sflag, size = 0x4, scoped, tag = 'scoped memory for tpu_custom_call.1']
    #allocation6 [shape = 's32[1]{0}', space=sflag, size = 0x4, scoped, tag = 'scoped memory for tpu_custom_call.1']
    #allocation7 [shape = 'u8[4096]{0}', space=vmem, size = 0x1000, scoped, tag = 'input window, operand 1, single buffered']
    #allocation8 [shape = 's32[1]{0}', space=sflag, size = 0x4, scoped, tag = 'scoped memory for tpu_custom_call.1']
    #allocation9 [shape = 'u8[8192]{0}', space=vmem, size = 0x2000, scoped, tag = 'input window, operand 2, single buffered']
    #allocation10 [shape = 'u8[65536]{0}', space=vmem, size = 0x10000, scoped, tag = 'input window, operand 3, single buffered']
    #allocation11 [shape = 's32[1]{0}', space=sflag, size = 0x4, scoped, tag = 'scoped memory for tpu_custom_call.1']
    #allocation12 [shape = 'u8[16384]{0}', space=vmem, size = 0x4000, scoped, tag = 'input window, operand 4, single buffered']
    #allocation13 [shape = 'u8[32768]{0}', space=vmem, size = 0x8000, scoped, tag = 'output window, operand 0, single buffered']
    %14 = vsyncpa [#allocation5], 0
    %15 = vsyncpa [#allocation8], 0
    %16 = vsyncpa [#allocation11], 0
    %17 = vsyncpa [#allocation6], 0
    // Predicated region
    $region2: #{tpu_custom_call.1} parent=1 // pred_check
      _
    $region3: #{tpu_custom_call.1} parent=1 // pred_check_branch
      %19 = sbr.rel (0) target = $region5
    $region4: #{tpu_custom_call.1} parent=1 // pred_region
      %s21 = ssub.s32 1024, 1024
      %22 = vsyncadd [#allocation5], %s21
      %s23 = sshll.u32 [#allocation4], 4
      %s24 = int_to_ptr.vmem [resolvable:$true] %s23
      %29 = dma.hbm_to_vmem [thread:$0]  %s0, 1024, %s24, [#allocation5], 128, 128, 8
    $region5: #{tpu_custom_call.1} parent=1 // pred_fallthru
      _
    // Predicated region
    $region6: #{tpu_custom_call.1} parent=1 // pred_check
      _
    $region7: #{tpu_custom_call.1} parent=1 // pred_check_branch
      %31 = sbr.rel (0) target = $region9
    $region8: #{tpu_custom_call.1} parent=1 // pred_region
      %s33 = ssub.s32 128, 128
      %34 = vsyncadd [#allocation8], %s33
      %s36 = sshll.u32 [#allocation7], 4
      %s37 = int_to_ptr.vmem [resolvable:$true] %s36
      %39 = dma.hbm_to_vmem [thread:$0]  %s1, 128, %s37, [#allocation8]
    $region9: #{tpu_custom_call.1} parent=1 // pred_fallthru
      _
    // Predicated region
    $region10: #{tpu_custom_call.1} parent=1 // pred_check
      _
    $region11: #{tpu_custom_call.1} parent=1 // pred_check_branch
      %41 = sbr.rel (0) target = $region13
    $region12: #{tpu_custom_call.1} parent=1 // pred_region
      %s43 = ssub.s32 256, 256
      %44 = vsyncadd [#allocation8], %s43
      %s45 = sshll.u32 [#allocation9], 4
      %s46 = int_to_ptr.vmem [resolvable:$true] %s45
      %51 = dma.hbm_to_vmem [thread:$0]  %s2, 256, %s46, [#allocation8], 128, 128, 8
    $region13: #{tpu_custom_call.1} parent=1 // pred_fallthru
      _
    // Predicated region
    $region14: #{tpu_custom_call.1} parent=1 // pred_check
      _
    $region15: #{tpu_custom_call.1} parent=1 // pred_check_branch
      %53 = sbr.rel (0) target = $region17
    $region16: #{tpu_custom_call.1} parent=1 // pred_region
      %s55 = ssub.s32 2048, 2048
      %56 = vsyncadd [#allocation11], %s55
      %s57 = sshll.u32 [#allocation10], 4
      %s58 = int_to_ptr.vmem [resolvable:$true] %s57
      %63 = dma.hbm_to_vmem [thread:$0]  %s3, 2048, %s58, [#allocation11], 256, 256, 16
    $region17: #{tpu_custom_call.1} parent=1 // pred_fallthru
      _
    // Predicated region
    $region18: #{tpu_custom_call.1} parent=1 // pred_check
      _
    $region19: #{tpu_custom_call.1} parent=1 // pred_check_branch
      %65 = sbr.rel (0) target = $region21
    $region20: #{tpu_custom_call.1} parent=1 // pred_region
      %s67 = ssub.s32 512, 512
      %68 = vsyncadd [#allocation11], %s67
      %s69 = sshll.u32 [#allocation12], 4
      %s70 = int_to_ptr.vmem [resolvable:$true] %s69
      %75 = dma.hbm_to_vmem [thread:$0]  %s4, 512, %s70, [#allocation11], 128, 128, 8
    $region21: #{tpu_custom_call.1} parent=1 // pred_fallthru
      _
    // Predicated region
    $region22: #{tpu_custom_call.1} parent=1 // pred_check
      _
    $region23: #{tpu_custom_call.1} parent=1 // pred_check_branch
      %77 = sbr.rel (0) target = $region25
    $region24: #{tpu_custom_call.1} parent=1 // pred_region
      _
    $region25: #{tpu_custom_call.1} parent=1 // pred_fallthru
      _
    // Predicated region
    $region26: #{tpu_custom_call.1} parent=1 // pred_check
      _
    $region27: #{tpu_custom_call.1} parent=1 // pred_check_branch
      %79 = sbr.rel (0) target = $region29
    $region28: #{tpu_custom_call.1} parent=1 // pred_region
      _
    $region29: #{tpu_custom_call.1} parent=1 // pred_fallthru
      _
    // Predicated region
    $region30: #{tpu_custom_call.1} parent=1 // pred_check
      _
    $region31: #{tpu_custom_call.1} parent=1 // pred_check_branch
      %81 = sbr.rel (0) target = $region33
    $region32: #{tpu_custom_call.1} parent=1 // pred_region
      _
    $region33: #{tpu_custom_call.1} parent=1 // pred_fallthru
      _
    // Predicated region
    $region34: #{tpu_custom_call.1} parent=1 // pred_check
      _
    $region35: #{tpu_custom_call.1} parent=1 // pred_check_branch
      %83 = sbr.rel (0) target = $region37
    $region36: #{tpu_custom_call.1} parent=1 // pred_region
      _
    $region37: #{tpu_custom_call.1} parent=1 // pred_fallthru
      _
    // Predicated region
    $region38: #{tpu_custom_call.1} parent=1 // pred_check
      _
    $region39: #{tpu_custom_call.1} parent=1 // pred_check_branch
      %85 = sbr.rel (0) target = $region41
    $region40: #{tpu_custom_call.1} parent=1 // pred_region
      %86 = dma.done [#allocation5], 1024
    $region41: #{tpu_custom_call.1} parent=1 // pred_fallthru
      _
    // Predicated region
    $region42: #{tpu_custom_call.1} parent=1 // pred_check
      _
    $region43: #{tpu_custom_call.1} parent=1 // pred_check_branch
      %88 = sbr.rel (0) target = $region45
    $region44: #{tpu_custom_call.1} parent=1 // pred_region
      %89 = dma.done [#allocation8], 128
    $region45: #{tpu_custom_call.1} parent=1 // pred_fallthru
      _
    // Predicated region
    $region46: #{tpu_custom_call.1} parent=1 // pred_check
      _
    $region47: #{tpu_custom_call.1} parent=1 // pred_check_branch
      %91 = sbr.rel (0) target = $region49
    $region48: #{tpu_custom_call.1} parent=1 // pred_region
      %92 = dma.done [#allocation8], 256
    $region49: #{tpu_custom_call.1} parent=1 // pred_fallthru
      _
    // Predicated region
    $region50: #{tpu_custom_call.1} parent=1 // pred_check
      _
    $region51: #{tpu_custom_call.1} parent=1 // pred_check_branch
      %94 = sbr.rel (0) target = $region53
    $region52: #{tpu_custom_call.1} parent=1 // pred_region
      %95 = dma.done [#allocation11], 2048
    $region53: #{tpu_custom_call.1} parent=1 // pred_fallthru
      _
    // Predicated region
    $region54: #{tpu_custom_call.1} parent=1 // pred_check
      _
    $region55: #{tpu_custom_call.1} parent=1 // pred_check_branch
      %97 = sbr.rel (0) target = $region57
    $region56: #{tpu_custom_call.1} parent=1 // pred_region
      %98 = dma.done [#allocation11], 512
    $region57: #{tpu_custom_call.1} parent=1 // pred_fallthru
      _
    %p99 = scmp.eq.s32.totalorder 0, 0
    // Predicated region
    $region58: #{tpu_custom_call.1} parent=1 // pred_check
      %p100 = pneg %p99
    $region59: #{tpu_custom_call.1} parent=1 // pred_check_branch
      %102 = sbr.rel (%p100) target = $region61
    $region60: #{tpu_custom_call.1} parent=1 // pred_region
      %v103 = vld [vmem:[#allocation7] sm:$0xff]
      %vm104 = vcmask 523264
      %105 = vst.msk [vmem:[#allocation2] sm:$0xff] %vm104, %v103
    $region61: #{tpu_custom_call.1} parent=1 // pred_fallthru
      _
    %v106 = vld [vmem:[#allocation4] sm:$0xff]
    %v107 = vld [vmem:[#allocation4 + $0x8] sm:$0xff]
    %v108 = vld [vmem:[#allocation4 + $0x10] sm:$0xff]
    %v109 = vld [vmem:[#allocation4 + $0x18] sm:$0xff]
    %v110 = vld [vmem:[#allocation4 + $0x20] sm:$0xff]
    %v111 = vld [vmem:[#allocation4 + $0x28] sm:$0xff]
    %v112 = vld [vmem:[#allocation4 + $0x30] sm:$0xff]
    %v113 = vld [vmem:[#allocation4 + $0x38] sm:$0xff]
    %v114 = vld [vmem:[#allocation9] sm:$0xff]
    %v115 = vld [vmem:[#allocation9 + $0x8] sm:$0x3]
    %v116 = vld [vmem:[%s5] sm:$0x1]
    %v118 = vlaneseq
    %v119 = vshrl.u32 %v118, 7
    %v120 = vsub.s32 0, %v119
    %v121 = vrot.slane %v116, %v120
    %vm123 = vcmask 80896
    %v125 = vsel %vm123, %v106, 0
    %v128 = vsel %vm123, %v107, 0
    %v131 = vsel %vm123, %v108, 0
    %v134 = vsel %vm123, %v109, 0
    %v137 = vsel %vm123, %v110, 0
    %v140 = vsel %vm123, %v111, 0
    %v143 = vsel %vm123, %v112, 0
    %v146 = vsel %vm123, %v113, 0
    %vm148 = vcmask 1041408
    %v150 = vsel %vm148, %v115, 0
    %152 = vmatprep.subr.mxu0 0.0
    %153 = vmatpush1.msra.mxu0 %v114
    %154 = vmatprep.subr.mxu0 0.0
    %155 = vmatpush1.msra.mxu0 %v150
    %156 = vmatprep.subr.mxu0 0.0
    %157 = vmatpush1.msra.mxu0 0.0
    %158 = vmatprep.subr.mxu0 0.0
    %159 = vmatpush1.msra.mxu0 0.0
    %160 = vmatprep.subr.mxu0 0.0
    %161 = vmatpush1.msra.mxu0 0.0
    %162 = vmatprep.subr.mxu0 0.0
    %163 = vmatpush1.msra.mxu0 0.0
    %164 = vmatprep.subr.mxu0 0.0
    %165 = vmatpush1.msra.mxu0 0.0
    %166 = vmatprep.subr.mxu0 0.0
    %167 = vmatpush1.msra.mxu0 0.0
    %168 = vmatprep.subr.mxu0 0.0
    %169 = vmatpush1.msra.mxu0 0.0
    %170 = vmatprep.subr.mxu0 0.0
    %171 = vmatpush1.msra.mxu0 0.0
    %172 = vmatprep.subr.mxu0 0.0
    %173 = vmatpush1.msra.mxu0 0.0
    %174 = vmatprep.subr.mxu0 0.0
    %175 = vmatpush1.msra.mxu0 0.0
    %176 = vmatprep.subr.mxu0 0.0
    %177 = vmatpush1.msra.mxu0 0.0
    %178 = vmatprep.subr.mxu0 0.0
    %179 = vmatpush1.msra.mxu0 0.0
    %180 = vmatprep.subr.mxu0 0.0
    %181 = vmatpush1.msra.mxu0 0.0
    %182 = vmatprep.subr.mxu0 0.0
    %183 = vmatpush1.msra.mxu0 0.0
    %184 = vmatprep.subr.mxu0 0.0
    %185 = vmatpush1.msra.mxu0 0.0
    %186 = vmatprep.subr.mxu0 0.0
    %187 = vmatpush1.msra.mxu0 0.0
    %188 = vmatprep.subr.mxu0 0.0
    %189 = vmatpush1.msra.mxu0 0.0
    %190 = vmatprep.subr.mxu0 0.0
    %191 = vmatpush1.msra.mxu0 0.0
    %192 = vmatprep.subr.mxu0 0.0
    %193 = vmatpush1.msra.mxu0 0.0
    %194 = vmatprep.subr.mxu0 0.0
    %195 = vmatpush1.msra.mxu0 0.0
    %196 = vmatprep.subr.mxu0 0.0
    %197 = vmatpush1.msra.mxu0 0.0
    %198 = vmatprep.subr.mxu0 0.0
    %199 = vmatpush1.msra.mxu0 0.0
    %200 = vmatprep.subr.mxu0 0.0
    %201 = vmatpush1.msra.mxu0 0.0
    %202 = vmatprep.subr.mxu0 0.0
    %203 = vmatpush1.msra.mxu0 0.0
    %204 = vmatprep.subr.mxu0 0.0
    %205 = vmatpush1.msra.mxu0 0.0
    %206 = vmatprep.subr.mxu0 0.0
    %207 = vmatpush1.msra.mxu0 0.0
    %208 = vmatprep.subr.mxu0 0.0
    %209 = vmatpush1.msra.mxu0 0.0
    %210 = vmatprep.subr.mxu0 0.0
    %211 = vmatpush1.msra.mxu0 0.0
    %212 = vmatprep.subr.mxu0 0.0
    %213 = vmatpush1.msra.mxu0 0.0
    %214 = vmatprep.subr.mxu0 0.0
    %215 = vmatpush1.msra.mxu0 0.0
    %216 = vmatprep.mubr.f32.mxu0 0.0
    %217 = vmatmul.mubr.f32.gmra.mrb[0].mxu0 %v125
    %v218 = vpop.f32.mrb[0].mxu0
    %v219 = vadd.f32 %v121, %v218
    %v220 = vpop.f32.mrb[0].mxu0
    %221 = vmatprep.mubr.f32.mxu0 0.0
    %222 = vmatmul.mubr.f32.gmra.mrb[0].mxu0 %v128
    %v223 = vpop.f32.mrb[0].mxu0
    %v224 = vadd.f32 %v121, %v223
    %v225 = vpop.f32.mrb[0].mxu0
    %226 = vmatprep.mubr.f32.mxu0 0.0
    %227 = vmatmul.mubr.f32.gmra.mrb[0].mxu0 %v131
    %v228 = vpop.f32.mrb[0].mxu0
    %v229 = vadd.f32 %v121, %v228
    %v230 = vpop.f32.mrb[0].mxu0
    %231 = vmatprep.mubr.f32.mxu0 0.0
    %232 = vmatmul.mubr.f32.gmra.mrb[0].mxu0 %v134
    %v233 = vpop.f32.mrb[0].mxu0
    %v234 = vadd.f32 %v121, %v233
    %v235 = vpop.f32.mrb[0].mxu0
    %236 = vmatprep.mubr.f32.mxu0 0.0
    %237 = vmatmul.mubr.f32.gmra.mrb[0].mxu0 %v137
    %v238 = vpop.f32.mrb[0].mxu0
    %v239 = vadd.f32 %v121, %v238
    %v240 = vpop.f32.mrb[0].mxu0
    %241 = vmatprep.mubr.f32.mxu0 0.0
    %242 = vmatmul.mubr.f32.gmra.mrb[0].mxu0 %v140
    %v243 = vpop.f32.mrb[0].mxu0
    %v244 = vadd.f32 %v121, %v243
    %v245 = vpop.f32.mrb[0].mxu0
    %246 = vmatprep.mubr.f32.mxu0 0.0
    %247 = vmatmul.mubr.f32.gmra.mrb[0].mxu0 %v143
    %v248 = vpop.f32.mrb[0].mxu0
    %v249 = vadd.f32 %v121, %v248
    %v250 = vpop.f32.mrb[0].mxu0
    %251 = vmatprep.mubr.f32.mxu0 0.0
    %252 = vmatmul.mubr.f32.gmra.mrb[0].mxu0 %v146
    %v253 = vpop.f32.mrb[0].mxu0
    %v254 = vadd.f32 %v121, %v253
    %v255 = vpop.f32.mrb[0].mxu0
    %256 = vdwg.mxu0
    %vm257 = vcmask 785408
    %258 = vst.msk [vmem:[#allocation3] sm:$0xff] %vm257, %v219
    %259 = vst.msk [vmem:[#allocation3 + $0x8] sm:$0xff] %vm257, %v224
    %260 = vst.msk [vmem:[#allocation3 + $0x10] sm:$0xff] %vm257, %v229
    %261 = vst.msk [vmem:[#allocation3 + $0x18] sm:$0xff] %vm257, %v234
    %262 = vst.msk [vmem:[#allocation3 + $0x20] sm:$0xff] %vm257, %v239
    %263 = vst.msk [vmem:[#allocation3 + $0x28] sm:$0xff] %vm257, %v244
    %264 = vst.msk [vmem:[#allocation3 + $0x30] sm:$0xff] %vm257, %v249
    %265 = vst.msk [vmem:[#allocation3 + $0x38] sm:$0xff] %vm257, %v254
    %v266 = vld [vmem:[#allocation10] sm:$0xff]
    %v267 = vld [vmem:[#allocation10 + $0x8] sm:$0xff]
    %v268 = vld [vmem:[#allocation10 + $0x10] sm:$0xff]
    %v269 = vld [vmem:[#allocation10 + $0x18] sm:$0xff]
    %v270 = vld [vmem:[#allocation10 + $0x20] sm:$0xff]
    %v271 = vld [vmem:[#allocation10 + $0x28] sm:$0xff]
    %v272 = vld [vmem:[#allocation10 + $0x30] sm:$0xff]
    %v273 = vld [vmem:[#allocation10 + $0x38] sm:$0xff]
    %v274 = vld [vmem:[#allocation10 + $0x40] sm:$0xff]
    %v275 = vld [vmem:[#allocation10 + $0x48] sm:$0xff]
    %v276 = vld [vmem:[#allocation10 + $0x50] sm:$0xff]
    %v277 = vld [vmem:[#allocation10 + $0x58] sm:$0xff]
    %v278 = vld [vmem:[#allocation10 + $0x60] sm:$0xff]
    %v279 = vld [vmem:[#allocation10 + $0x68] sm:$0xff]
    %v280 = vld [vmem:[#allocation10 + $0x70] sm:$0xff]
    %v281 = vld [vmem:[#allocation10 + $0x78] sm:$0xff]
    %v282 = vld [vmem:[#allocation12] sm:$0xff]
    %v283 = vld [vmem:[#allocation12 + $0x8] sm:$0xff]
    %v284 = vld [vmem:[#allocation12 + $0x10] sm:$0xff]
    %v285 = vld [vmem:[#allocation12 + $0x18] sm:$0xff]
    %v286 = vld [vmem:[%s7] sm:$0x1]
    %v288 = vlaneseq
    %v289 = vshrl.u32 %v288, 7
    %v290 = vsub.s32 0, %v289
    %v291 = vrot.slane %v286, %v290
    %v293 = vld [vmem:[%s6] sm:$0x1]
    %v295 = vlaneseq
    %v296 = vshrl.u32 %v295, 7
    %v297 = vsub.s32 0, %v296
    %v298 = vrot.slane %v293, %v297
    %v299 = vld [vmem:[%s8] sm:$0x1]
    %v301 = vlaneseq
    %v302 = vshrl.u32 %v301, 7
    %v303 = vsub.s32 0, %v302
    %v304 = vrot.slane %v299, %v303
    %v305 = vld [vmem:[#allocation2] sm:$0xff]
    %vm306 = vcmask 261120
    %vm307 = vcmask 523264
    %v309 = vsel %vm307, %v305, 0
    %311 = vmatprep.subr.mxu0 %v267
    %312 = vmatpush1.msra.mxu0 %v266
    %313 = vmatprep.subr.mxu0 %v269
    %314 = vmatpush1.msra.mxu0 %v268
    %315 = vmatprep.subr.mxu0 %v271
    %316 = vmatpush1.msra.mxu0 %v270
    %317 = vmatprep.subr.mxu0 %v273
    %318 = vmatpush1.msra.mxu0 %v272
    %319 = vmatprep.subr.mxu0 %v275
    %320 = vmatpush1.msra.mxu0 %v274
    %321 = vmatprep.subr.mxu0 %v277
    %322 = vmatpush1.msra.mxu0 %v276
    %323 = vmatprep.subr.mxu0 %v279
    %324 = vmatpush1.msra.mxu0 %v278
    %325 = vmatprep.subr.mxu0 %v281
    %326 = vmatpush1.msra.mxu0 %v280
    %327 = vmatprep.subr.mxu0 0.0
    %328 = vmatpush1.msra.mxu0 0.0
    %329 = vmatprep.subr.mxu0 0.0
    %330 = vmatpush1.msra.mxu0 0.0
    %331 = vmatprep.subr.mxu0 0.0
    %332 = vmatpush1.msra.mxu0 0.0
    %333 = vmatprep.subr.mxu0 0.0
    %334 = vmatpush1.msra.mxu0 0.0
    %335 = vmatprep.subr.mxu0 0.0
    %336 = vmatpush1.msra.mxu0 0.0
    %337 = vmatprep.subr.mxu0 0.0
    %338 = vmatpush1.msra.mxu0 0.0
    %339 = vmatprep.subr.mxu0 0.0
    %340 = vmatpush1.msra.mxu0 0.0
    %341 = vmatprep.subr.mxu0 0.0
    %342 = vmatpush1.msra.mxu0 0.0
    %343 = vmatprep.subr.mxu0 0.0
    %344 = vmatpush1.msra.mxu0 0.0
    %345 = vmatprep.subr.mxu0 0.0
    %346 = vmatpush1.msra.mxu0 0.0
    %347 = vmatprep.subr.mxu0 0.0
    %348 = vmatpush1.msra.mxu0 0.0
    %349 = vmatprep.subr.mxu0 0.0
    %350 = vmatpush1.msra.mxu0 0.0
    %351 = vmatprep.subr.mxu0 0.0
    %352 = vmatpush1.msra.mxu0 0.0
    %353 = vmatprep.subr.mxu0 0.0
    %354 = vmatpush1.msra.mxu0 0.0
    %355 = vmatprep.subr.mxu0 0.0
    %356 = vmatpush1.msra.mxu0 0.0
    %357 = vmatprep.subr.mxu0 0.0
    %358 = vmatpush1.msra.mxu0 0.0
    %359 = vmatprep.subr.mxu0 0.0
    %360 = vmatpush1.msra.mxu0 0.0
    %361 = vmatprep.subr.mxu0 0.0
    %362 = vmatpush1.msra.mxu0 0.0
    %363 = vmatprep.subr.mxu0 0.0
    %364 = vmatpush1.msra.mxu0 0.0
    %365 = vmatprep.subr.mxu0 0.0
    %366 = vmatpush1.msra.mxu0 0.0
    %367 = vmatprep.subr.mxu0 0.0
    %368 = vmatpush1.msra.mxu0 0.0
    %369 = vmatprep.subr.mxu0 0.0
    %370 = vmatpush1.msra.mxu0 0.0
    %371 = vmatprep.subr.mxu0 0.0
    %372 = vmatpush1.msra.mxu0 0.0
    %373 = vmatprep.subr.mxu0 0.0
    %374 = vmatpush1.msra.mxu0 0.0
    %375 = vmatprep.mubr.f32.mxu0 0.0
    %376 = vmatmul.mubr.f32.gmra.mrb[0].mxu0 %v309
    %v377 = vpop.f32.mrb[0].mxu0
    %v378 = vadd.f32 0.0, %v377
    %v379 = vpop.f32.mrb[0].mxu0
    %v380 = vadd.f32 0.0, %v379
    %381 = vdwg.mxu0
    %v382 = vld [vmem:[#allocation3] sm:$0xff]
    %v383 = vadd.f32 %v382, %v378
    %v384 = vxor.u32 %v383, 2147483648
    %v385 = vmul.f32 %v384, 1.442695
    %v386 = vpow.pop %v385
    %v387 = vadd.f32 %v386, 1.0
    %v388 = vrcp.pop %v387
    %v389 = vmul.f32 1.0, %v388
    %390 = vrot.lane.b32.xlu0 %v298, 64
    %v391 = vpop.permute.xlu0 %390
    %v393 = vadd.f32 %v378, %v391
    %395 = vrot.lane.b32.xlu0 %v393, 64
    %v396 = vpop.permute.xlu0 %395
    %v398 = vmul.f32 %v389, %v396
    %400 = vrot.lane.b32.xlu0 %v398, 64
    %v401 = vpop.permute.xlu0 %400
    %v403 = vadd.f32 %v382, %v401
    %v404 = vtanh.pop %v403
    %v405 = vsub.f32 1.0, %v389
    %407 = vrot.lane.b32.xlu0 %v404, 96
    %v408 = vpop.permute.xlu0 %407
    %v410 = vmul.f32 %v405, %v408
    %411 = vrot.lane.b32.xlu0 %v305, 32
    %v412 = vpop.permute.xlu0 %411
    %v414 = vmul.f32 %v389, %v412
    %v415 = vadd.f32 %v410, %v414
    %417 = vrot.lane.b32.xlu0 %v415, 96
    %v418 = vpop.permute.xlu0 %417
    %v419 = vsel %vm306, %v418, 0
    %421 = vmatprep.subr.mxu0 0.0
    %422 = vmatpush1.msra.mxu0 %v282
    %423 = vmatprep.subr.mxu0 0.0
    %424 = vmatpush1.msra.mxu0 %v283
    %425 = vmatprep.subr.mxu0 0.0
    %426 = vmatpush1.msra.mxu0 %v284
    %427 = vmatprep.subr.mxu0 0.0
    %428 = vmatpush1.msra.mxu0 %v285
    %429 = vmatprep.subr.mxu0 0.0
    %430 = vmatpush1.msra.mxu0 0.0
    %431 = vmatprep.subr.mxu0 0.0
    %432 = vmatpush1.msra.mxu0 0.0
    %433 = vmatprep.subr.mxu0 0.0
    %434 = vmatpush1.msra.mxu0 0.0
    %435 = vmatprep.subr.mxu0 0.0
    %436 = vmatpush1.msra.mxu0 0.0
    %437 = vmatprep.subr.mxu0 0.0
    %438 = vmatpush1.msra.mxu0 0.0
    %439 = vmatprep.subr.mxu0 0.0
    %440 = vmatpush1.msra.mxu0 0.0
    %441 = vmatprep.subr.mxu0 0.0
    %442 = vmatpush1.msra.mxu0 0.0
    %443 = vmatprep.subr.mxu0 0.0
    %444 = vmatpush1.msra.mxu0 0.0
    %445 = vmatprep.subr.mxu0 0.0
    %446 = vmatpush1.msra.mxu0 0.0
    %447 = vmatprep.subr.mxu0 0.0
    %448 = vmatpush1.msra.mxu0 0.0
    %449 = vmatprep.subr.mxu0 0.0
    %450 = vmatpush1.msra.mxu0 0.0
    %451 = vmatprep.subr.mxu0 0.0
    %452 = vmatpush1.msra.mxu0 0.0
    %453 = vmatprep.subr.mxu0 0.0
    %454 = vmatpush1.msra.mxu0 0.0
    %455 = vmatprep.subr.mxu0 0.0
    %456 = vmatpush1.msra.mxu0 0.0
    %457 = vmatprep.subr.mxu0 0.0
    %458 = vmatpush1.msra.mxu0 0.0
    %459 = vmatprep.subr.mxu0 0.0
    %460 = vmatpush1.msra.mxu0 0.0
    %461 = vmatprep.subr.mxu0 0.0
    %462 = vmatpush1.msra.mxu0 0.0
    %463 = vmatprep.subr.mxu0 0.0
    %464 = vmatpush1.msra.mxu0 0.0
    %465 = vmatprep.subr.mxu0 0.0
    %466 = vmatpush1.msra.mxu0 0.0
    %467 = vmatprep.subr.mxu0 0.0
    %468 = vmatpush1.msra.mxu0 0.0
    %469 = vmatprep.subr.mxu0 0.0
    %470 = vmatpush1.msra.mxu0 0.0
    %471 = vmatprep.subr.mxu0 0.0
    %472 = vmatpush1.msra.mxu0 0.0
    %473 = vmatprep.subr.mxu0 0.0
    %474 = vmatpush1.msra.mxu0 0.0
    %475 = vmatprep.subr.mxu0 0.0
    %476 = vmatpush1.msra.mxu0 0.0
    %477 = vmatprep.subr.mxu0 0.0
    %478 = vmatpush1.msra.mxu0 0.0
    %479 = vmatprep.subr.mxu0 0.0
    %480 = vmatpush1.msra.mxu0 0.0
    %481 = vmatprep.subr.mxu0 0.0
    %482 = vmatpush1.msra.mxu0 0.0
    %483 = vmatprep.subr.mxu0 0.0
    %484 = vmatpush1.msra.mxu0 0.0
    %485 = vmatprep.mubr.f32.mxu0 0.0
    %486 = vmatmul.mubr.f32.gmra.mrb[0].mxu0 %v419
    %v487 = vpop.f32.mrb[0].mxu0
    %v488 = vadd.f32 %v291, %v487
    %v489 = vpop.f32.mrb[0].mxu0
    %490 = vdwg.mxu0
    %493 = vrot.lane.b32.xlu0 %v378, 32
    %v494 = vpop.permute.xlu0 %493
    %495 = vrot.lane.b32.xlu0 %v380, 32
    %v496 = vpop.permute.xlu0 %495
    %v497 = vsel %vm306, %v494, %v496
    %v499 = vadd.f32 %v488, %v497
    %v500 = vxor.u32 %v499, 2147483648
    %v501 = vmul.f32 %v500, 1.442695
    %v502 = vpow.pop %v501
    %v503 = vadd.f32 %v502, 1.0
    %v504 = vrcp.pop %v503
    %v505 = vmul.f32 1.0, %v504
    %506 = vrot.lane.b32.xlu0 %v304, 32
    %v507 = vpop.permute.xlu0 %506
    %v509 = vadd.f32 %v380, %v507
    %511 = vrot.lane.b32.xlu0 %v509, 96
    %v512 = vpop.permute.xlu0 %511
    %v514 = vmul.f32 %v505, %v512
    %516 = vrot.lane.b32.xlu0 %v514, 64
    %v517 = vpop.permute.xlu0 %516
    %v519 = vadd.f32 %v488, %v517
    %v520 = vtanh.pop %v519
    %v521 = vsub.f32 1.0, %v505
    %523 = vrot.lane.b32.xlu0 %v520, 96
    %v524 = vpop.permute.xlu0 %523
    %v526 = vmul.f32 %v521, %v524
    %v527 = vmul.f32 %v505, %v305
    %v528 = vadd.f32 %v526, %v527
    %530 = vrot.lane.b32.xlu0 %v528, 96
    %v531 = vpop.permute.xlu0 %530
    %533 = vst.msk [vmem:[#allocation13] sm:$0xff] %vm306, %v531
    %v535 = vsel %vm306, %v418, %v528
    %v537 = vsel %vm307, %v535, 0
    %539 = vmatprep.subr.mxu0 %v267
    %540 = vmatpush1.msra.mxu0 %v266
    %541 = vmatprep.subr.mxu0 %v269
    %542 = vmatpush1.msra.mxu0 %v268
    %543 = vmatprep.subr.mxu0 %v271
    %544 = vmatpush1.msra.mxu0 %v270
    %545 = vmatprep.subr.mxu0 %v273
    %546 = vmatpush1.msra.mxu0 %v272
    %547 = vmatprep.subr.mxu0 %v275
    %548 = vmatpush1.msra.mxu0 %v274
    %549 = vmatprep.subr.mxu0 %v277
    %550 = vmatpush1.msra.mxu0 %v276
    %551 = vmatprep.subr.mxu0 %v279
    %552 = vmatpush1.msra.mxu0 %v278
    %553 = vmatprep.subr.mxu0 %v281
    %554 = vmatpush1.msra.mxu0 %v280
    %555 = vmatprep.subr.mxu0 0.0
    %556 = vmatpush1.msra.mxu0 0.0
    %557 = vmatprep.subr.mxu0 0.0
    %558 = vmatpush1.msra.mxu0 0.0
    %559 = vmatprep.subr.mxu0 0.0
    %560 = vmatpush1.msra.mxu0 0.0
    %561 = vmatprep.subr.mxu0 0.0
    %562 = vmatpush1.msra.mxu0 0.0
    %563 = vmatprep.subr.mxu0 0.0
    %564 = vmatpush1.msra.mxu0 0.0
    %565 = vmatprep.subr.mxu0 0.0
    %566 = vmatpush1.msra.mxu0 0.0
    %567 = vmatprep.subr.mxu0 0.0
    %568 = vmatpush1.msra.mxu0 0.0
    %569 = vmatprep.subr.mxu0 0.0
    %570 = vmatpush1.msra.mxu0 0.0
    %571 = vmatprep.subr.mxu0 0.0
    %572 = vmatpush1.msra.mxu0 0.0
    %573 = vmatprep.subr.mxu0 0.0
    %574 = vmatpush1.msra.mxu0 0.0
    %575 = vmatprep.subr.mxu0 0.0
    %576 = vmatpush1.msra.mxu0 0.0
    %577 = vmatprep.subr.mxu0 0.0
    %578 = vmatpush1.msra.mxu0 0.0
    %579 = vmatprep.subr.mxu0 0.0
    %580 = vmatpush1.msra.mxu0 0.0
    %581 = vmatprep.subr.mxu0 0.0
    %582 = vmatpush1.msra.mxu0 0.0
    %583 = vmatprep.subr.mxu0 0.0
    %584 = vmatpush1.msra.mxu0 0.0
    %585 = vmatprep.subr.mxu0 0.0
    %586 = vmatpush1.msra.mxu0 0.0
    %587 = vmatprep.subr.mxu0 0.0
    %588 = vmatpush1.msra.mxu0 0.0
    %589 = vmatprep.subr.mxu0 0.0
    %590 = vmatpush1.msra.mxu0 0.0
    %591 = vmatprep.subr.mxu0 0.0
    %592 = vmatpush1.msra.mxu0 0.0
    %593 = vmatprep.subr.mxu0 0.0
    %594 = vmatpush1.msra.mxu0 0.0
    %595 = vmatprep.subr.mxu0 0.0
    %596 = vmatpush1.msra.mxu0 0.0
    %597 = vmatprep.subr.mxu0 0.0
    %598 = vmatpush1.msra.mxu0 0.0
    %599 = vmatprep.subr.mxu0 0.0
    %600 = vmatpush1.msra.mxu0 0.0
    %601 = vmatprep.subr.mxu0 0.0
    %602 = vmatpush1.msra.mxu0 0.0
    %603 = vmatprep.mubr.f32.mxu0 0.0
    %604 = vmatmul.mubr.f32.gmra.mrb[0].mxu0 %v537
    %v605 = vpop.f32.mrb[0].mxu0
    %v606 = vadd.f32 0.0, %v605
    %v607 = vpop.f32.mrb[0].mxu0
    %v608 = vadd.f32 0.0, %v607
    %609 = vdwg.mxu0
    %s610 = scalar_lea.vmem [#allocation3], 8
    %v611 = vld [vmem:[%s610] sm:$0xff]
    %v612 = vadd.f32 %v611, %v606
    %v613 = vxor.u32 %v612, 2147483648
    %v614 = vmul.f32 %v613, 1.442695
    %v615 = vpow.pop %v614
    %v616 = vadd.f32 %v615, 1.0
    %v617 = vrcp.pop %v616
    %v618 = vmul.f32 1.0, %v617
    %v619 = vadd.f32 %v606, %v391
    %621 = vrot.lane.b32.xlu0 %v619, 64
    %v622 = vpop.permute.xlu0 %621
    %v624 = vmul.f32 %v618, %v622
    %626 = vrot.lane.b32.xlu0 %v624, 64
    %v627 = vpop.permute.xlu0 %626
    %v629 = vadd.f32 %v611, %v627
    %v630 = vtanh.pop %v629
    %v631 = vsub.f32 1.0, %v618
    %633 = vrot.lane.b32.xlu0 %v630, 96
    %v634 = vpop.permute.xlu0 %633
    %v636 = vmul.f32 %v631, %v634
    %v637 = vmul.f32 %v618, %v415
    %v638 = vadd.f32 %v636, %v637
    %640 = vrot.lane.b32.xlu0 %v638, 96
    %v641 = vpop.permute.xlu0 %640
    %v642 = vsel %vm306, %v641, 0
    %644 = vmatprep.subr.mxu0 0.0
    %645 = vmatpush1.msra.mxu0 %v282
    %646 = vmatprep.subr.mxu0 0.0
    %647 = vmatpush1.msra.mxu0 %v283
    %648 = vmatprep.subr.mxu0 0.0
    %649 = vmatpush1.msra.mxu0 %v284
    %650 = vmatprep.subr.mxu0 0.0
    %651 = vmatpush1.msra.mxu0 %v285
    %652 = vmatprep.subr.mxu0 0.0
    %653 = vmatpush1.msra.mxu0 0.0
    %654 = vmatprep.subr.mxu0 0.0
    %655 = vmatpush1.msra.mxu0 0.0
    %656 = vmatprep.subr.mxu0 0.0
    %657 = vmatpush1.msra.mxu0 0.0
    %658 = vmatprep.subr.mxu0 0.0
    %659 = vmatpush1.msra.mxu0 0.0
    %660 = vmatprep.subr.mxu0 0.0
    %661 = vmatpush1.msra.mxu0 0.0
    %662 = vmatprep.subr.mxu0 0.0
    %663 = vmatpush1.msra.mxu0 0.0
    %664 = vmatprep.subr.mxu0 0.0
    %665 = vmatpush1.msra.mxu0 0.0
    %666 = vmatprep.subr.mxu0 0.0
    %667 = vmatpush1.msra.mxu0 0.0
    %668 = vmatprep.subr.mxu0 0.0
    %669 = vmatpush1.msra.mxu0 0.0
    %670 = vmatprep.subr.mxu0 0.0
    %671 = vmatpush1.msra.mxu0 0.0
    %672 = vmatprep.subr.mxu0 0.0
    %673 = vmatpush1.msra.mxu0 0.0
    %674 = vmatprep.subr.mxu0 0.0
    %675 = vmatpush1.msra.mxu0 0.0
    %676 = vmatprep.subr.mxu0 0.0
    %677 = vmatpush1.msra.mxu0 0.0
    %678 = vmatprep.subr.mxu0 0.0
    %679 = vmatpush1.msra.mxu0 0.0
    %680 = vmatprep.subr.mxu0 0.0
    %681 = vmatpush1.msra.mxu0 0.0
    %682 = vmatprep.subr.mxu0 0.0
    %683 = vmatpush1.msra.mxu0 0.0
    %684 = vmatprep.subr.mxu0 0.0
    %685 = vmatpush1.msra.mxu0 0.0
    %686 = vmatprep.subr.mxu0 0.0
    %687 = vmatpush1.msra.mxu0 0.0
    %688 = vmatprep.subr.mxu0 0.0
    %689 = vmatpush1.msra.mxu0 0.0
    %690 = vmatprep.subr.mxu0 0.0
    %691 = vmatpush1.msra.mxu0 0.0
    %692 = vmatprep.subr.mxu0 0.0
    %693 = vmatpush1.msra.mxu0 0.0
    %694 = vmatprep.subr.mxu0 0.0
    %695 = vmatpush1.msra.mxu0 0.0
    %696 = vmatprep.subr.mxu0 0.0
    %697 = vmatpush1.msra.mxu0 0.0
    %698 = vmatprep.subr.mxu0 0.0
    %699 = vmatpush1.msra.mxu0 0.0
    %700 = vmatprep.subr.mxu0 0.0
    %701 = vmatpush1.msra.mxu0 0.0
    %702 = vmatprep.subr.mxu0 0.0
    %703 = vmatpush1.msra.mxu0 0.0
    %704 = vmatprep.subr.mxu0 0.0
    %705 = vmatpush1.msra.mxu0 0.0
    %706 = vmatprep.subr.mxu0 0.0
    %707 = vmatpush1.msra.mxu0 0.0
    %708 = vmatprep.mubr.f32.mxu0 0.0
    %709 = vmatmul.mubr.f32.gmra.mrb[0].mxu0 %v642
    %v710 = vpop.f32.mrb[0].mxu0
    %v711 = vadd.f32 %v291, %v710
    %v712 = vpop.f32.mrb[0].mxu0
    %713 = vdwg.mxu0
    %716 = vrot.lane.b32.xlu0 %v606, 32
    %v717 = vpop.permute.xlu0 %716
    %718 = vrot.lane.b32.xlu0 %v608, 32
    %v719 = vpop.permute.xlu0 %718
    %v720 = vsel %vm306, %v717, %v719
    %v722 = vadd.f32 %v711, %v720
    %v723 = vxor.u32 %v722, 2147483648
    %v724 = vmul.f32 %v723, 1.442695
    %v725 = vpow.pop %v724
    %v726 = vadd.f32 %v725, 1.0
    %v727 = vrcp.pop %v726
    %v728 = vmul.f32 1.0, %v727
    %v729 = vadd.f32 %v608, %v507
    %731 = vrot.lane.b32.xlu0 %v729, 96
    %v732 = vpop.permute.xlu0 %731
    %v734 = vmul.f32 %v728, %v732
    %736 = vrot.lane.b32.xlu0 %v734, 64
    %v737 = vpop.permute.xlu0 %736
    %v739 = vadd.f32 %v711, %v737
    %v740 = vtanh.pop %v739
    %v741 = vsub.f32 1.0, %v728
    %743 = vrot.lane.b32.xlu0 %v740, 96
    %v744 = vpop.permute.xlu0 %743
    %v746 = vmul.f32 %v741, %v744
    %v747 = vmul.f32 %v728, %v528
    %v748 = vadd.f32 %v746, %v747
    %750 = vrot.lane.b32.xlu0 %v748, 96
    %v751 = vpop.permute.xlu0 %750
    %s753 = scalar_lea.vmem [#allocation13], 8
    %754 = vst.msk [vmem:[%s753] sm:$0xff] %vm306, %v751
    %v756 = vsel %vm306, %v641, %v748
    %v758 = vsel %vm307, %v756, 0
    %760 = vmatprep.subr.mxu0 %v267
    %761 = vmatpush1.msra.mxu0 %v266
    %762 = vmatprep.subr.mxu0 %v269
    %763 = vmatpush1.msra.mxu0 %v268
    %764 = vmatprep.subr.mxu0 %v271
    %765 = vmatpush1.msra.mxu0 %v270
    %766 = vmatprep.subr.mxu0 %v273
    %767 = vmatpush1.msra.mxu0 %v272
    %768 = vmatprep.subr.mxu0 %v275
    %769 = vmatpush1.msra.mxu0 %v274
    %770 = vmatprep.subr.mxu0 %v277
    %771 = vmatpush1.msra.mxu0 %v276
    %772 = vmatprep.subr.mxu0 %v279
    %773 = vmatpush1.msra.mxu0 %v278
    %774 = vmatprep.subr.mxu0 %v281
    %775 = vmatpush1.msra.mxu0 %v280
    %776 = vmatprep.subr.mxu0 0.0
    %777 = vmatpush1.msra.mxu0 0.0
    %778 = vmatprep.subr.mxu0 0.0
    %779 = vmatpush1.msra.mxu0 0.0
    %780 = vmatprep.subr.mxu0 0.0
    %781 = vmatpush1.msra.mxu0 0.0
    %782 = vmatprep.subr.mxu0 0.0
    %783 = vmatpush1.msra.mxu0 0.0
    %784 = vmatprep.subr.mxu0 0.0
    %785 = vmatpush1.msra.mxu0 0.0
    %786 = vmatprep.subr.mxu0 0.0
    %787 = vmatpush1.msra.mxu0 0.0
    %788 = vmatprep.subr.mxu0 0.0
    %789 = vmatpush1.msra.mxu0 0.0
    %790 = vmatprep.subr.mxu0 0.0
    %791 = vmatpush1.msra.mxu0 0.0
    %792 = vmatprep.subr.mxu0 0.0
    %793 = vmatpush1.msra.mxu0 0.0
    %794 = vmatprep.subr.mxu0 0.0
    %795 = vmatpush1.msra.mxu0 0.0
    %796 = vmatprep.subr.mxu0 0.0
    %797 = vmatpush1.msra.mxu0 0.0
    %798 = vmatprep.subr.mxu0 0.0
    %799 = vmatpush1.msra.mxu0 0.0
    %800 = vmatprep.subr.mxu0 0.0
    %801 = vmatpush1.msra.mxu0 0.0
    %802 = vmatprep.subr.mxu0 0.0
    %803 = vmatpush1.msra.mxu0 0.0
    %804 = vmatprep.subr.mxu0 0.0
    %805 = vmatpush1.msra.mxu0 0.0
    %806 = vmatprep.subr.mxu0 0.0
    %807 = vmatpush1.msra.mxu0 0.0
    %808 = vmatprep.subr.mxu0 0.0
    %809 = vmatpush1.msra.mxu0 0.0
    %810 = vmatprep.subr.mxu0 0.0
    %811 = vmatpush1.msra.mxu0 0.0
    %812 = vmatprep.subr.mxu0 0.0
    %813 = vmatpush1.msra.mxu0 0.0
    %814 = vmatprep.subr.mxu0 0.0
    %815 = vmatpush1.msra.mxu0 0.0
    %816 = vmatprep.subr.mxu0 0.0
    %817 = vmatpush1.msra.mxu0 0.0
    %818 = vmatprep.subr.mxu0 0.0
    %819 = vmatpush1.msra.mxu0 0.0
    %820 = vmatprep.subr.mxu0 0.0
    %821 = vmatpush1.msra.mxu0 0.0
    %822 = vmatprep.subr.mxu0 0.0
    %823 = vmatpush1.msra.mxu0 0.0
    %824 = vmatprep.mubr.f32.mxu0 0.0
    %825 = vmatmul.mubr.f32.gmra.mrb[0].mxu0 %v758
    %v826 = vpop.f32.mrb[0].mxu0
    %v827 = vadd.f32 0.0, %v826
    %v828 = vpop.f32.mrb[0].mxu0
    %v829 = vadd.f32 0.0, %v828
    %830 = vdwg.mxu0
    %s831 = scalar_lea.vmem [#allocation3], 16
    %v832 = vld [vmem:[%s831] sm:$0xff]
    %v833 = vadd.f32 %v832, %v827
    %v834 = vxor.u32 %v833, 2147483648
    %v835 = vmul.f32 %v834, 1.442695
    %v836 = vpow.pop %v835
    %v837 = vadd.f32 %v836, 1.0
    %v838 = vrcp.pop %v837
    %v839 = vmul.f32 1.0, %v838
    %v840 = vadd.f32 %v827, %v391
    %842 = vrot.lane.b32.xlu0 %v840, 64
    %v843 = vpop.permute.xlu0 %842
    %v845 = vmul.f32 %v839, %v843
    %847 = vrot.lane.b32.xlu0 %v845, 64
    %v848 = vpop.permute.xlu0 %847
    %v850 = vadd.f32 %v832, %v848
    %v851 = vtanh.pop %v850
    %v852 = vsub.f32 1.0, %v839
    %854 = vrot.lane.b32.xlu0 %v851, 96
    %v855 = vpop.permute.xlu0 %854
    %v857 = vmul.f32 %v852, %v855
    %v858 = vmul.f32 %v839, %v638
    %v859 = vadd.f32 %v857, %v858
    %861 = vrot.lane.b32.xlu0 %v859, 96
    %v862 = vpop.permute.xlu0 %861
    %v863 = vsel %vm306, %v862, 0
    %865 = vmatprep.subr.mxu0 0.0
    %866 = vmatpush1.msra.mxu0 %v282
    %867 = vmatprep.subr.mxu0 0.0
    %868 = vmatpush1.msra.mxu0 %v283
    %869 = vmatprep.subr.mxu0 0.0
    %870 = vmatpush1.msra.mxu0 %v284
    %871 = vmatprep.subr.mxu0 0.0
    %872 = vmatpush1.msra.mxu0 %v285
    %873 = vmatprep.subr.mxu0 0.0
    %874 = vmatpush1.msra.mxu0 0.0
    %875 = vmatprep.subr.mxu0 0.0
    %876 = vmatpush1.msra.mxu0 0.0
    %877 = vmatprep.subr.mxu0 0.0
    %878 = vmatpush1.msra.mxu0 0.0
    %879 = vmatprep.subr.mxu0 0.0
    %880 = vmatpush1.msra.mxu0 0.0
    %881 = vmatprep.subr.mxu0 0.0
    %882 = vmatpush1.msra.mxu0 0.0
    %883 = vmatprep.subr.mxu0 0.0
    %884 = vmatpush1.msra.mxu0 0.0
    %885 = vmatprep.subr.mxu0 0.0
    %886 = vmatpush1.msra.mxu0 0.0
    %887 = vmatprep.subr.mxu0 0.0
    %888 = vmatpush1.msra.mxu0 0.0
    %889 = vmatprep.subr.mxu0 0.0
    %890 = vmatpush1.msra.mxu0 0.0
    %891 = vmatprep.subr.mxu0 0.0
    %892 = vmatpush1.msra.mxu0 0.0
    %893 = vmatprep.subr.mxu0 0.0
    %894 = vmatpush1.msra.mxu0 0.0
    %895 = vmatprep.subr.mxu0 0.0
    %896 = vmatpush1.msra.mxu0 0.0
    %897 = vmatprep.subr.mxu0 0.0
    %898 = vmatpush1.msra.mxu0 0.0
    %899 = vmatprep.subr.mxu0 0.0
    %900 = vmatpush1.msra.mxu0 0.0
    %901 = vmatprep.subr.mxu0 0.0
    %902 = vmatpush1.msra.mxu0 0.0
    %903 = vmatprep.subr.mxu0 0.0
    %904 = vmatpush1.msra.mxu0 0.0
    %905 = vmatprep.subr.mxu0 0.0
    %906 = vmatpush1.msra.mxu0 0.0
    %907 = vmatprep.subr.mxu0 0.0
    %908 = vmatpush1.msra.mxu0 0.0
    %909 = vmatprep.subr.mxu0 0.0
    %910 = vmatpush1.msra.mxu0 0.0
    %911 = vmatprep.subr.mxu0 0.0
    %912 = vmatpush1.msra.mxu0 0.0
    %913 = vmatprep.subr.mxu0 0.0
    %914 = vmatpush1.msra.mxu0 0.0
    %915 = vmatprep.subr.mxu0 0.0
    %916 = vmatpush1.msra.mxu0 0.0
    %917 = vmatprep.subr.mxu0 0.0
    %918 = vmatpush1.msra.mxu0 0.0
    %919 = vmatprep.subr.mxu0 0.0
    %920 = vmatpush1.msra.mxu0 0.0
    %921 = vmatprep.subr.mxu0 0.0
    %922 = vmatpush1.msra.mxu0 0.0
    %923 = vmatprep.subr.mxu0 0.0
    %924 = vmatpush1.msra.mxu0 0.0
    %925 = vmatprep.subr.mxu0 0.0
    %926 = vmatpush1.msra.mxu0 0.0
    %927 = vmatprep.subr.mxu0 0.0
    %928 = vmatpush1.msra.mxu0 0.0
    %929 = vmatprep.mubr.f32.mxu0 0.0
    %930 = vmatmul.mubr.f32.gmra.mrb[0].mxu0 %v863
    %v931 = vpop.f32.mrb[0].mxu0
    %v932 = vadd.f32 %v291, %v931
    %v933 = vpop.f32.mrb[0].mxu0
    %934 = vdwg.mxu0
    %937 = vrot.lane.b32.xlu0 %v827, 32
    %v938 = vpop.permute.xlu0 %937
    %939 = vrot.lane.b32.xlu0 %v829, 32
    %v940 = vpop.permute.xlu0 %939
    %v941 = vsel %vm306, %v938, %v940
    %v943 = vadd.f32 %v932, %v941
    %v944 = vxor.u32 %v943, 2147483648
    %v945 = vmul.f32 %v944, 1.442695
    %v946 = vpow.pop %v945
    %v947 = vadd.f32 %v946, 1.0
    %v948 = vrcp.pop %v947
    %v949 = vmul.f32 1.0, %v948
    %v950 = vadd.f32 %v829, %v507
    %952 = vrot.lane.b32.xlu0 %v950, 96
    %v953 = vpop.permute.xlu0 %952
    %v955 = vmul.f32 %v949, %v953
    %957 = vrot.lane.b32.xlu0 %v955, 64
    %v958 = vpop.permute.xlu0 %957
    %v960 = vadd.f32 %v932, %v958
    %v961 = vtanh.pop %v960
    %v962 = vsub.f32 1.0, %v949
    %964 = vrot.lane.b32.xlu0 %v961, 96
    %v965 = vpop.permute.xlu0 %964
    %v967 = vmul.f32 %v962, %v965
    %v968 = vmul.f32 %v949, %v748
    %v969 = vadd.f32 %v967, %v968
    %971 = vrot.lane.b32.xlu0 %v969, 96
    %v972 = vpop.permute.xlu0 %971
    %s974 = scalar_lea.vmem [#allocation13], 16
    %975 = vst.msk [vmem:[%s974] sm:$0xff] %vm306, %v972
    %v977 = vsel %vm306, %v862, %v969
    %v979 = vsel %vm307, %v977, 0
    %981 = vmatprep.subr.mxu0 %v267
    %982 = vmatpush1.msra.mxu0 %v266
    %983 = vmatprep.subr.mxu0 %v269
    %984 = vmatpush1.msra.mxu0 %v268
    %985 = vmatprep.subr.mxu0 %v271
    %986 = vmatpush1.msra.mxu0 %v270
    %987 = vmatprep.subr.mxu0 %v273
    %988 = vmatpush1.msra.mxu0 %v272
    %989 = vmatprep.subr.mxu0 %v275
    %990 = vmatpush1.msra.mxu0 %v274
    %991 = vmatprep.subr.mxu0 %v277
    %992 = vmatpush1.msra.mxu0 %v276
    %993 = vmatprep.subr.mxu0 %v279
    %994 = vmatpush1.msra.mxu0 %v278
    %995 = vmatprep.subr.mxu0 %v281
    %996 = vmatpush1.msra.mxu0 %v280
    %997 = vmatprep.subr.mxu0 0.0
    %998 = vmatpush1.msra.mxu0 0.0
    %999 = vmatprep.subr.mxu0 0.0
    %1000 = vmatpush1.msra.mxu0 0.0
    %1001 = vmatprep.subr.mxu0 0.0
    %1002 = vmatpush1.msra.mxu0 0.0
    %1003 = vmatprep.subr.mxu0 0.0
    %1004 = vmatpush1.msra.mxu0 0.0
    %1005 = vmatprep.subr.mxu0 0.0
    %1006 = vmatpush1.msra.mxu0 0.0
    %1007 = vmatprep.subr.mxu0 0.0
    %1008 = vmatpush1.msra.mxu0 0.0
    %1009 = vmatprep.subr.mxu0 0.0
    %1010 = vmatpush1.msra.mxu0 0.0
    %1011 = vmatprep.subr.mxu0 0.0
    %1012 = vmatpush1.msra.mxu0 0.0
    %1013 = vmatprep.subr.mxu0 0.0
    %1014 = vmatpush1.msra.mxu0 0.0
    %1015 = vmatprep.subr.mxu0 0.0
    %1016 = vmatpush1.msra.mxu0 0.0
    %1017 = vmatprep.subr.mxu0 0.0
    %1018 = vmatpush1.msra.mxu0 0.0
    %1019 = vmatprep.subr.mxu0 0.0
    %1020 = vmatpush1.msra.mxu0 0.0
    %1021 = vmatprep.subr.mxu0 0.0
    %1022 = vmatpush1.msra.mxu0 0.0
    %1023 = vmatprep.subr.mxu0 0.0
    %1024 = vmatpush1.msra.mxu0 0.0
    %1025 = vmatprep.subr.mxu0 0.0
    %1026 = vmatpush1.msra.mxu0 0.0
    %1027 = vmatprep.subr.mxu0 0.0
    %1028 = vmatpush1.msra.mxu0 0.0
    %1029 = vmatprep.subr.mxu0 0.0
    %1030 = vmatpush1.msra.mxu0 0.0
    %1031 = vmatprep.subr.mxu0 0.0
    %1032 = vmatpush1.msra.mxu0 0.0
    %1033 = vmatprep.subr.mxu0 0.0
    %1034 = vmatpush1.msra.mxu0 0.0
    %1035 = vmatprep.subr.mxu0 0.0
    %1036 = vmatpush1.msra.mxu0 0.0
    %1037 = vmatprep.subr.mxu0 0.0
    %1038 = vmatpush1.msra.mxu0 0.0
    %1039 = vmatprep.subr.mxu0 0.0
    %1040 = vmatpush1.msra.mxu0 0.0
    %1041 = vmatprep.subr.mxu0 0.0
    %1042 = vmatpush1.msra.mxu0 0.0
    %1043 = vmatprep.subr.mxu0 0.0
    %1044 = vmatpush1.msra.mxu0 0.0
    %1045 = vmatprep.mubr.f32.mxu0 0.0
    %1046 = vmatmul.mubr.f32.gmra.mrb[0].mxu0 %v979
    %v1047 = vpop.f32.mrb[0].mxu0
    %v1048 = vadd.f32 0.0, %v1047
    %v1049 = vpop.f32.mrb[0].mxu0
    %v1050 = vadd.f32 0.0, %v1049
    %1051 = vdwg.mxu0
    %s1052 = scalar_lea.vmem [#allocation3], 24
    %v1053 = vld [vmem:[%s1052] sm:$0xff]
    %v1054 = vadd.f32 %v1053, %v1048
    %v1055 = vxor.u32 %v1054, 2147483648
    %v1056 = vmul.f32 %v1055, 1.442695
    %v1057 = vpow.pop %v1056
    %v1058 = vadd.f32 %v1057, 1.0
    %v1059 = vrcp.pop %v1058
    %v1060 = vmul.f32 1.0, %v1059
    %v1061 = vadd.f32 %v1048, %v391
    %1063 = vrot.lane.b32.xlu0 %v1061, 64
    %v1064 = vpop.permute.xlu0 %1063
    %v1066 = vmul.f32 %v1060, %v1064
    %1068 = vrot.lane.b32.xlu0 %v1066, 64
    %v1069 = vpop.permute.xlu0 %1068
    %v1071 = vadd.f32 %v1053, %v1069
    %v1072 = vtanh.pop %v1071
    %v1073 = vsub.f32 1.0, %v1060
    %1075 = vrot.lane.b32.xlu0 %v1072, 96
    %v1076 = vpop.permute.xlu0 %1075
    %v1078 = vmul.f32 %v1073, %v1076
    %v1079 = vmul.f32 %v1060, %v859
    %v1080 = vadd.f32 %v1078, %v1079
    %1082 = vrot.lane.b32.xlu0 %v1080, 96
    %v1083 = vpop.permute.xlu0 %1082
    %v1084 = vsel %vm306, %v1083, 0
    %1086 = vmatprep.subr.mxu0 0.0
    %1087 = vmatpush1.msra.mxu0 %v282
    %1088 = vmatprep.subr.mxu0 0.0
    %1089 = vmatpush1.msra.mxu0 %v283
    %1090 = vmatprep.subr.mxu0 0.0
    %1091 = vmatpush1.msra.mxu0 %v284
    %1092 = vmatprep.subr.mxu0 0.0
    %1093 = vmatpush1.msra.mxu0 %v285
    %1094 = vmatprep.subr.mxu0 0.0
    %1095 = vmatpush1.msra.mxu0 0.0
    %1096 = vmatprep.subr.mxu0 0.0
    %1097 = vmatpush1.msra.mxu0 0.0
    %1098 = vmatprep.subr.mxu0 0.0
    %1099 = vmatpush1.msra.mxu0 0.0
    %1100 = vmatprep.subr.mxu0 0.0
    %1101 = vmatpush1.msra.mxu0 0.0
    %1102 = vmatprep.subr.mxu0 0.0
    %1103 = vmatpush1.msra.mxu0 0.0
    %1104 = vmatprep.subr.mxu0 0.0
    %1105 = vmatpush1.msra.mxu0 0.0
    %1106 = vmatprep.subr.mxu0 0.0
    %1107 = vmatpush1.msra.mxu0 0.0
    %1108 = vmatprep.subr.mxu0 0.0
    %1109 = vmatpush1.msra.mxu0 0.0
    %1110 = vmatprep.subr.mxu0 0.0
    %1111 = vmatpush1.msra.mxu0 0.0
    %1112 = vmatprep.subr.mxu0 0.0
    %1113 = vmatpush1.msra.mxu0 0.0
    %1114 = vmatprep.subr.mxu0 0.0
    %1115 = vmatpush1.msra.mxu0 0.0
    %1116 = vmatprep.subr.mxu0 0.0
    %1117 = vmatpush1.msra.mxu0 0.0
    %1118 = vmatprep.subr.mxu0 0.0
    %1119 = vmatpush1.msra.mxu0 0.0
    %1120 = vmatprep.subr.mxu0 0.0
    %1121 = vmatpush1.msra.mxu0 0.0
    %1122 = vmatprep.subr.mxu0 0.0
    %1123 = vmatpush1.msra.mxu0 0.0
    %1124 = vmatprep.subr.mxu0 0.0
    %1125 = vmatpush1.msra.mxu0 0.0
    %1126 = vmatprep.subr.mxu0 0.0
    %1127 = vmatpush1.msra.mxu0 0.0
    %1128 = vmatprep.subr.mxu0 0.0
    %1129 = vmatpush1.msra.mxu0 0.0
    %1130 = vmatprep.subr.mxu0 0.0
    %1131 = vmatpush1.msra.mxu0 0.0
    %1132 = vmatprep.subr.mxu0 0.0
    %1133 = vmatpush1.msra.mxu0 0.0
    %1134 = vmatprep.subr.mxu0 0.0
    %1135 = vmatpush1.msra.mxu0 0.0
    %1136 = vmatprep.subr.mxu0 0.0
    %1137 = vmatpush1.msra.mxu0 0.0
    %1138 = vmatprep.subr.mxu0 0.0
    %1139 = vmatpush1.msra.mxu0 0.0
    %1140 = vmatprep.subr.mxu0 0.0
    %1141 = vmatpush1.msra.mxu0 0.0
    %1142 = vmatprep.subr.mxu0 0.0
    %1143 = vmatpush1.msra.mxu0 0.0
    %1144 = vmatprep.subr.mxu0 0.0
    %1145 = vmatpush1.msra.mxu0 0.0
    %1146 = vmatprep.subr.mxu0 0.0
    %1147 = vmatpush1.msra.mxu0 0.0
    %1148 = vmatprep.subr.mxu0 0.0
    %1149 = vmatpush1.msra.mxu0 0.0
    %1150 = vmatprep.mubr.f32.mxu0 0.0
    %1151 = vmatmul.mubr.f32.gmra.mrb[0].mxu0 %v1084
    %v1152 = vpop.f32.mrb[0].mxu0
    %v1153 = vadd.f32 %v291, %v1152
    %v1154 = vpop.f32.mrb[0].mxu0
    %1155 = vdwg.mxu0
    %1158 = vrot.lane.b32.xlu0 %v1048, 32
    %v1159 = vpop.permute.xlu0 %1158
    %1160 = vrot.lane.b32.xlu0 %v1050, 32
    %v1161 = vpop.permute.xlu0 %1160
    %v1162 = vsel %vm306, %v1159, %v1161
    %v1164 = vadd.f32 %v1153, %v1162
    %v1165 = vxor.u32 %v1164, 2147483648
    %v1166 = vmul.f32 %v1165, 1.442695
    %v1167 = vpow.pop %v1166
    %v1168 = vadd.f32 %v1167, 1.0
    %v1169 = vrcp.pop %v1168
    %v1170 = vmul.f32 1.0, %v1169
    %v1171 = vadd.f32 %v1050, %v507
    %1173 = vrot.lane.b32.xlu0 %v1171, 96
    %v1174 = vpop.permute.xlu0 %1173
    %v1176 = vmul.f32 %v1170, %v1174
    %1178 = vrot.lane.b32.xlu0 %v1176, 64
    %v1179 = vpop.permute.xlu0 %1178
    %v1181 = vadd.f32 %v1153, %v1179
    %v1182 = vtanh.pop %v1181
    %v1183 = vsub.f32 1.0, %v1170
    %1185 = vrot.lane.b32.xlu0 %v1182, 96
    %v1186 = vpop.permute.xlu0 %1185
    %v1188 = vmul.f32 %v1183, %v1186
    %v1189 = vmul.f32 %v1170, %v969
    %v1190 = vadd.f32 %v1188, %v1189
    %1192 = vrot.lane.b32.xlu0 %v1190, 96
    %v1193 = vpop.permute.xlu0 %1192
    %s1195 = scalar_lea.vmem [#allocation13], 24
    %1196 = vst.msk [vmem:[%s1195] sm:$0xff] %vm306, %v1193
    %v1198 = vsel %vm306, %v1083, %v1190
    %v1200 = vsel %vm307, %v1198, 0
    %1202 = vmatprep.subr.mxu0 %v267
    %1203 = vmatpush1.msra.mxu0 %v266
    %1204 = vmatprep.subr.mxu0 %v269
    %1205 = vmatpush1.msra.mxu0 %v268
    %1206 = vmatprep.subr.mxu0 %v271
    %1207 = vmatpush1.msra.mxu0 %v270
    %1208 = vmatprep.subr.mxu0 %v273
    %1209 = vmatpush1.msra.mxu0 %v272
    %1210 = vmatprep.subr.mxu0 %v275
    %1211 = vmatpush1.msra.mxu0 %v274
    %1212 = vmatprep.subr.mxu0 %v277
    %1213 = vmatpush1.msra.mxu0 %v276
    %1214 = vmatprep.subr.mxu0 %v279
    %1215 = vmatpush1.msra.mxu0 %v278
    %1216 = vmatprep.subr.mxu0 %v281
    %1217 = vmatpush1.msra.mxu0 %v280
    %1218 = vmatprep.subr.mxu0 0.0
    %1219 = vmatpush1.msra.mxu0 0.0
    %1220 = vmatprep.subr.mxu0 0.0
    %1221 = vmatpush1.msra.mxu0 0.0
    %1222 = vmatprep.subr.mxu0 0.0
    %1223 = vmatpush1.msra.mxu0 0.0
    %1224 = vmatprep.subr.mxu0 0.0
    %1225 = vmatpush1.msra.mxu0 0.0
    %1226 = vmatprep.subr.mxu0 0.0
    %1227 = vmatpush1.msra.mxu0 0.0
    %1228 = vmatprep.subr.mxu0 0.0
    %1229 = vmatpush1.msra.mxu0 0.0
    %1230 = vmatprep.subr.mxu0 0.0
    %1231 = vmatpush1.msra.mxu0 0.0
    %1232 = vmatprep.subr.mxu0 0.0
    %1233 = vmatpush1.msra.mxu0 0.0
    %1234 = vmatprep.subr.mxu0 0.0
    %1235 = vmatpush1.msra.mxu0 0.0
    %1236 = vmatprep.subr.mxu0 0.0
    %1237 = vmatpush1.msra.mxu0 0.0
    %1238 = vmatprep.subr.mxu0 0.0
    %1239 = vmatpush1.msra.mxu0 0.0
    %1240 = vmatprep.subr.mxu0 0.0
    %1241 = vmatpush1.msra.mxu0 0.0
    %1242 = vmatprep.subr.mxu0 0.0
    %1243 = vmatpush1.msra.mxu0 0.0
    %1244 = vmatprep.subr.mxu0 0.0
    %1245 = vmatpush1.msra.mxu0 0.0
    %1246 = vmatprep.subr.mxu0 0.0
    %1247 = vmatpush1.msra.mxu0 0.0
    %1248 = vmatprep.subr.mxu0 0.0
    %1249 = vmatpush1.msra.mxu0 0.0
    %1250 = vmatprep.subr.mxu0 0.0
    %1251 = vmatpush1.msra.mxu0 0.0
    %1252 = vmatprep.subr.mxu0 0.0
    %1253 = vmatpush1.msra.mxu0 0.0
    %1254 = vmatprep.subr.mxu0 0.0
    %1255 = vmatpush1.msra.mxu0 0.0
    %1256 = vmatprep.subr.mxu0 0.0
    %1257 = vmatpush1.msra.mxu0 0.0
    %1258 = vmatprep.subr.mxu0 0.0
    %1259 = vmatpush1.msra.mxu0 0.0
    %1260 = vmatprep.subr.mxu0 0.0
    %1261 = vmatpush1.msra.mxu0 0.0
    %1262 = vmatprep.subr.mxu0 0.0
    %1263 = vmatpush1.msra.mxu0 0.0
    %1264 = vmatprep.subr.mxu0 0.0
    %1265 = vmatpush1.msra.mxu0 0.0
    %1266 = vmatprep.mubr.f32.mxu0 0.0
    %1267 = vmatmul.mubr.f32.gmra.mrb[0].mxu0 %v1200
    %v1268 = vpop.f32.mrb[0].mxu0
    %v1269 = vadd.f32 0.0, %v1268
    %v1270 = vpop.f32.mrb[0].mxu0
    %v1271 = vadd.f32 0.0, %v1270
    %1272 = vdwg.mxu0
    %s1273 = scalar_lea.vmem [#allocation3], 32
    %v1274 = vld [vmem:[%s1273] sm:$0xff]
    %v1275 = vadd.f32 %v1274, %v1269
    %v1276 = vxor.u32 %v1275, 2147483648
    %v1277 = vmul.f32 %v1276, 1.442695
    %v1278 = vpow.pop %v1277
    %v1279 = vadd.f32 %v1278, 1.0
    %v1280 = vrcp.pop %v1279
    %v1281 = vmul.f32 1.0, %v1280
    %v1282 = vadd.f32 %v1269, %v391
    %1284 = vrot.lane.b32.xlu0 %v1282, 64
    %v1285 = vpop.permute.xlu0 %1284
    %v1287 = vmul.f32 %v1281, %v1285
    %1289 = vrot.lane.b32.xlu0 %v1287, 64
    %v1290 = vpop.permute.xlu0 %1289
    %v1292 = vadd.f32 %v1274, %v1290
    %v1293 = vtanh.pop %v1292
    %v1294 = vsub.f32 1.0, %v1281
    %1296 = vrot.lane.b32.xlu0 %v1293, 96
    %v1297 = vpop.permute.xlu0 %1296
    %v1299 = vmul.f32 %v1294, %v1297
    %v1300 = vmul.f32 %v1281, %v1080
    %v1301 = vadd.f32 %v1299, %v1300
    %1303 = vrot.lane.b32.xlu0 %v1301, 96
    %v1304 = vpop.permute.xlu0 %1303
    %v1305 = vsel %vm306, %v1304, 0
    %1307 = vmatprep.subr.mxu0 0.0
    %1308 = vmatpush1.msra.mxu0 %v282
    %1309 = vmatprep.subr.mxu0 0.0
    %1310 = vmatpush1.msra.mxu0 %v283
    %1311 = vmatprep.subr.mxu0 0.0
    %1312 = vmatpush1.msra.mxu0 %v284
    %1313 = vmatprep.subr.mxu0 0.0
    %1314 = vmatpush1.msra.mxu0 %v285
    %1315 = vmatprep.subr.mxu0 0.0
    %1316 = vmatpush1.msra.mxu0 0.0
    %1317 = vmatprep.subr.mxu0 0.0
    %1318 = vmatpush1.msra.mxu0 0.0
    %1319 = vmatprep.subr.mxu0 0.0
    %1320 = vmatpush1.msra.mxu0 0.0
    %1321 = vmatprep.subr.mxu0 0.0
    %1322 = vmatpush1.msra.mxu0 0.0
    %1323 = vmatprep.subr.mxu0 0.0
    %1324 = vmatpush1.msra.mxu0 0.0
    %1325 = vmatprep.subr.mxu0 0.0
    %1326 = vmatpush1.msra.mxu0 0.0
    %1327 = vmatprep.subr.mxu0 0.0
    %1328 = vmatpush1.msra.mxu0 0.0
    %1329 = vmatprep.subr.mxu0 0.0
    %1330 = vmatpush1.msra.mxu0 0.0
    %1331 = vmatprep.subr.mxu0 0.0
    %1332 = vmatpush1.msra.mxu0 0.0
    %1333 = vmatprep.subr.mxu0 0.0
    %1334 = vmatpush1.msra.mxu0 0.0
    %1335 = vmatprep.subr.mxu0 0.0
    %1336 = vmatpush1.msra.mxu0 0.0
    %1337 = vmatprep.subr.mxu0 0.0
    %1338 = vmatpush1.msra.mxu0 0.0
    %1339 = vmatprep.subr.mxu0 0.0
    %1340 = vmatpush1.msra.mxu0 0.0
    %1341 = vmatprep.subr.mxu0 0.0
    %1342 = vmatpush1.msra.mxu0 0.0
    %1343 = vmatprep.subr.mxu0 0.0
    %1344 = vmatpush1.msra.mxu0 0.0
    %1345 = vmatprep.subr.mxu0 0.0
    %1346 = vmatpush1.msra.mxu0 0.0
    %1347 = vmatprep.subr.mxu0 0.0
    %1348 = vmatpush1.msra.mxu0 0.0
    %1349 = vmatprep.subr.mxu0 0.0
    %1350 = vmatpush1.msra.mxu0 0.0
    %1351 = vmatprep.subr.mxu0 0.0
    %1352 = vmatpush1.msra.mxu0 0.0
    %1353 = vmatprep.subr.mxu0 0.0
    %1354 = vmatpush1.msra.mxu0 0.0
    %1355 = vmatprep.subr.mxu0 0.0
    %1356 = vmatpush1.msra.mxu0 0.0
    %1357 = vmatprep.subr.mxu0 0.0
    %1358 = vmatpush1.msra.mxu0 0.0
    %1359 = vmatprep.subr.mxu0 0.0
    %1360 = vmatpush1.msra.mxu0 0.0
    %1361 = vmatprep.subr.mxu0 0.0
    %1362 = vmatpush1.msra.mxu0 0.0
    %1363 = vmatprep.subr.mxu0 0.0
    %1364 = vmatpush1.msra.mxu0 0.0
    %1365 = vmatprep.subr.mxu0 0.0
    %1366 = vmatpush1.msra.mxu0 0.0
    %1367 = vmatprep.subr.mxu0 0.0
    %1368 = vmatpush1.msra.mxu0 0.0
    %1369 = vmatprep.subr.mxu0 0.0
    %1370 = vmatpush1.msra.mxu0 0.0
    %1371 = vmatprep.mubr.f32.mxu0 0.0
    %1372 = vmatmul.mubr.f32.gmra.mrb[0].mxu0 %v1305
    %v1373 = vpop.f32.mrb[0].mxu0
    %v1374 = vadd.f32 %v291, %v1373
    %v1375 = vpop.f32.mrb[0].mxu0
    %1376 = vdwg.mxu0
    %1379 = vrot.lane.b32.xlu0 %v1269, 32
    %v1380 = vpop.permute.xlu0 %1379
    %1381 = vrot.lane.b32.xlu0 %v1271, 32
    %v1382 = vpop.permute.xlu0 %1381
    %v1383 = vsel %vm306, %v1380, %v1382
    %v1385 = vadd.f32 %v1374, %v1383
    %v1386 = vxor.u32 %v1385, 2147483648
    %v1387 = vmul.f32 %v1386, 1.442695
    %v1388 = vpow.pop %v1387
    %v1389 = vadd.f32 %v1388, 1.0
    %v1390 = vrcp.pop %v1389
    %v1391 = vmul.f32 1.0, %v1390
    %v1392 = vadd.f32 %v1271, %v507
    %1394 = vrot.lane.b32.xlu0 %v1392, 96
    %v1395 = vpop.permute.xlu0 %1394
    %v1397 = vmul.f32 %v1391, %v1395
    %1399 = vrot.lane.b32.xlu0 %v1397, 64
    %v1400 = vpop.permute.xlu0 %1399
    %v1402 = vadd.f32 %v1374, %v1400
    %v1403 = vtanh.pop %v1402
    %v1404 = vsub.f32 1.0, %v1391
    %1406 = vrot.lane.b32.xlu0 %v1403, 96
    %v1407 = vpop.permute.xlu0 %1406
    %v1409 = vmul.f32 %v1404, %v1407
    %v1410 = vmul.f32 %v1391, %v1190
    %v1411 = vadd.f32 %v1409, %v1410
    %1413 = vrot.lane.b32.xlu0 %v1411, 96
    %v1414 = vpop.permute.xlu0 %1413
    %s1416 = scalar_lea.vmem [#allocation13], 32
    %1417 = vst.msk [vmem:[%s1416] sm:$0xff] %vm306, %v1414
    %v1419 = vsel %vm306, %v1304, %v1411
    %v1421 = vsel %vm307, %v1419, 0
    %1423 = vmatprep.subr.mxu0 %v267
    %1424 = vmatpush1.msra.mxu0 %v266
    %1425 = vmatprep.subr.mxu0 %v269
    %1426 = vmatpush1.msra.mxu0 %v268
    %1427 = vmatprep.subr.mxu0 %v271
    %1428 = vmatpush1.msra.mxu0 %v270
    %1429 = vmatprep.subr.mxu0 %v273
    %1430 = vmatpush1.msra.mxu0 %v272
    %1431 = vmatprep.subr.mxu0 %v275
    %1432 = vmatpush1.msra.mxu0 %v274
    %1433 = vmatprep.subr.mxu0 %v277
    %1434 = vmatpush1.msra.mxu0 %v276
    %1435 = vmatprep.subr.mxu0 %v279
    %1436 = vmatpush1.msra.mxu0 %v278
    %1437 = vmatprep.subr.mxu0 %v281
    %1438 = vmatpush1.msra.mxu0 %v280
    %1439 = vmatprep.subr.mxu0 0.0
    %1440 = vmatpush1.msra.mxu0 0.0
    %1441 = vmatprep.subr.mxu0 0.0
    %1442 = vmatpush1.msra.mxu0 0.0
    %1443 = vmatprep.subr.mxu0 0.0
    %1444 = vmatpush1.msra.mxu0 0.0
    %1445 = vmatprep.subr.mxu0 0.0
    %1446 = vmatpush1.msra.mxu0 0.0
    %1447 = vmatprep.subr.mxu0 0.0
    %1448 = vmatpush1.msra.mxu0 0.0
    %1449 = vmatprep.subr.mxu0 0.0
    %1450 = vmatpush1.msra.mxu0 0.0
    %1451 = vmatprep.subr.mxu0 0.0
    %1452 = vmatpush1.msra.mxu0 0.0
    %1453 = vmatprep.subr.mxu0 0.0
    %1454 = vmatpush1.msra.mxu0 0.0
    %1455 = vmatprep.subr.mxu0 0.0
    %1456 = vmatpush1.msra.mxu0 0.0
    %1457 = vmatprep.subr.mxu0 0.0
    %1458 = vmatpush1.msra.mxu0 0.0
    %1459 = vmatprep.subr.mxu0 0.0
    %1460 = vmatpush1.msra.mxu0 0.0
    %1461 = vmatprep.subr.mxu0 0.0
    %1462 = vmatpush1.msra.mxu0 0.0
    %1463 = vmatprep.subr.mxu0 0.0
    %1464 = vmatpush1.msra.mxu0 0.0
    %1465 = vmatprep.subr.mxu0 0.0
    %1466 = vmatpush1.msra.mxu0 0.0
    %1467 = vmatprep.subr.mxu0 0.0
    %1468 = vmatpush1.msra.mxu0 0.0
    %1469 = vmatprep.subr.mxu0 0.0
    %1470 = vmatpush1.msra.mxu0 0.0
    %1471 = vmatprep.subr.mxu0 0.0
    %1472 = vmatpush1.msra.mxu0 0.0
    %1473 = vmatprep.subr.mxu0 0.0
    %1474 = vmatpush1.msra.mxu0 0.0
    %1475 = vmatprep.subr.mxu0 0.0
    %1476 = vmatpush1.msra.mxu0 0.0
    %1477 = vmatprep.subr.mxu0 0.0
    %1478 = vmatpush1.msra.mxu0 0.0
    %1479 = vmatprep.subr.mxu0 0.0
    %1480 = vmatpush1.msra.mxu0 0.0
    %1481 = vmatprep.subr.mxu0 0.0
    %1482 = vmatpush1.msra.mxu0 0.0
    %1483 = vmatprep.subr.mxu0 0.0
    %1484 = vmatpush1.msra.mxu0 0.0
    %1485 = vmatprep.subr.mxu0 0.0
    %1486 = vmatpush1.msra.mxu0 0.0
    %1487 = vmatprep.mubr.f32.mxu0 0.0
    %1488 = vmatmul.mubr.f32.gmra.mrb[0].mxu0 %v1421
    %v1489 = vpop.f32.mrb[0].mxu0
    %v1490 = vadd.f32 0.0, %v1489
    %v1491 = vpop.f32.mrb[0].mxu0
    %v1492 = vadd.f32 0.0, %v1491
    %1493 = vdwg.mxu0
    %s1494 = scalar_lea.vmem [#allocation3], 40
    %v1495 = vld [vmem:[%s1494] sm:$0xff]
    %v1496 = vadd.f32 %v1495, %v1490
    %v1497 = vxor.u32 %v1496, 2147483648
    %v1498 = vmul.f32 %v1497, 1.442695
    %v1499 = vpow.pop %v1498
    %v1500 = vadd.f32 %v1499, 1.0
    %v1501 = vrcp.pop %v1500
    %v1502 = vmul.f32 1.0, %v1501
    %v1503 = vadd.f32 %v1490, %v391
    %1505 = vrot.lane.b32.xlu0 %v1503, 64
    %v1506 = vpop.permute.xlu0 %1505
    %v1508 = vmul.f32 %v1502, %v1506
    %1510 = vrot.lane.b32.xlu0 %v1508, 64
    %v1511 = vpop.permute.xlu0 %1510
    %v1513 = vadd.f32 %v1495, %v1511
    %v1514 = vtanh.pop %v1513
    %v1515 = vsub.f32 1.0, %v1502
    %1517 = vrot.lane.b32.xlu0 %v1514, 96
    %v1518 = vpop.permute.xlu0 %1517
    %v1520 = vmul.f32 %v1515, %v1518
    %v1521 = vmul.f32 %v1502, %v1301
    %v1522 = vadd.f32 %v1520, %v1521
    %1524 = vrot.lane.b32.xlu0 %v1522, 96
    %v1525 = vpop.permute.xlu0 %1524
    %v1526 = vsel %vm306, %v1525, 0
    %1528 = vmatprep.subr.mxu0 0.0
    %1529 = vmatpush1.msra.mxu0 %v282
    %1530 = vmatprep.subr.mxu0 0.0
    %1531 = vmatpush1.msra.mxu0 %v283
    %1532 = vmatprep.subr.mxu0 0.0
    %1533 = vmatpush1.msra.mxu0 %v284
    %1534 = vmatprep.subr.mxu0 0.0
    %1535 = vmatpush1.msra.mxu0 %v285
    %1536 = vmatprep.subr.mxu0 0.0
    %1537 = vmatpush1.msra.mxu0 0.0
    %1538 = vmatprep.subr.mxu0 0.0
    %1539 = vmatpush1.msra.mxu0 0.0
    %1540 = vmatprep.subr.mxu0 0.0
    %1541 = vmatpush1.msra.mxu0 0.0
    %1542 = vmatprep.subr.mxu0 0.0
    %1543 = vmatpush1.msra.mxu0 0.0
    %1544 = vmatprep.subr.mxu0 0.0
    %1545 = vmatpush1.msra.mxu0 0.0
    %1546 = vmatprep.subr.mxu0 0.0
    %1547 = vmatpush1.msra.mxu0 0.0
    %1548 = vmatprep.subr.mxu0 0.0
    %1549 = vmatpush1.msra.mxu0 0.0
    %1550 = vmatprep.subr.mxu0 0.0
    %1551 = vmatpush1.msra.mxu0 0.0
    %1552 = vmatprep.subr.mxu0 0.0
    %1553 = vmatpush1.msra.mxu0 0.0
    %1554 = vmatprep.subr.mxu0 0.0
    %1555 = vmatpush1.msra.mxu0 0.0
    %1556 = vmatprep.subr.mxu0 0.0
    %1557 = vmatpush1.msra.mxu0 0.0
    %1558 = vmatprep.subr.mxu0 0.0
    %1559 = vmatpush1.msra.mxu0 0.0
    %1560 = vmatprep.subr.mxu0 0.0
    %1561 = vmatpush1.msra.mxu0 0.0
    %1562 = vmatprep.subr.mxu0 0.0
    %1563 = vmatpush1.msra.mxu0 0.0
    %1564 = vmatprep.subr.mxu0 0.0
    %1565 = vmatpush1.msra.mxu0 0.0
    %1566 = vmatprep.subr.mxu0 0.0
    %1567 = vmatpush1.msra.mxu0 0.0
    %1568 = vmatprep.subr.mxu0 0.0
    %1569 = vmatpush1.msra.mxu0 0.0
    %1570 = vmatprep.subr.mxu0 0.0
    %1571 = vmatpush1.msra.mxu0 0.0
    %1572 = vmatprep.subr.mxu0 0.0
    %1573 = vmatpush1.msra.mxu0 0.0
    %1574 = vmatprep.subr.mxu0 0.0
    %1575 = vmatpush1.msra.mxu0 0.0
    %1576 = vmatprep.subr.mxu0 0.0
    %1577 = vmatpush1.msra.mxu0 0.0
    %1578 = vmatprep.subr.mxu0 0.0
    %1579 = vmatpush1.msra.mxu0 0.0
    %1580 = vmatprep.subr.mxu0 0.0
    %1581 = vmatpush1.msra.mxu0 0.0
    %1582 = vmatprep.subr.mxu0 0.0
    %1583 = vmatpush1.msra.mxu0 0.0
    %1584 = vmatprep.subr.mxu0 0.0
    %1585 = vmatpush1.msra.mxu0 0.0
    %1586 = vmatprep.subr.mxu0 0.0
    %1587 = vmatpush1.msra.mxu0 0.0
    %1588 = vmatprep.subr.mxu0 0.0
    %1589 = vmatpush1.msra.mxu0 0.0
    %1590 = vmatprep.subr.mxu0 0.0
    %1591 = vmatpush1.msra.mxu0 0.0
    %1592 = vmatprep.mubr.f32.mxu0 0.0
    %1593 = vmatmul.mubr.f32.gmra.mrb[0].mxu0 %v1526
    %v1594 = vpop.f32.mrb[0].mxu0
    %v1595 = vadd.f32 %v291, %v1594
    %v1596 = vpop.f32.mrb[0].mxu0
    %1597 = vdwg.mxu0
    %1600 = vrot.lane.b32.xlu0 %v1490, 32
    %v1601 = vpop.permute.xlu0 %1600
    %1602 = vrot.lane.b32.xlu0 %v1492, 32
    %v1603 = vpop.permute.xlu0 %1602
    %v1604 = vsel %vm306, %v1601, %v1603
    %v1606 = vadd.f32 %v1595, %v1604
    %v1607 = vxor.u32 %v1606, 2147483648
    %v1608 = vmul.f32 %v1607, 1.442695
    %v1609 = vpow.pop %v1608
    %v1610 = vadd.f32 %v1609, 1.0
    %v1611 = vrcp.pop %v1610
    %v1612 = vmul.f32 1.0, %v1611
    %v1613 = vadd.f32 %v1492, %v507
    %1615 = vrot.lane.b32.xlu0 %v1613, 96
    %v1616 = vpop.permute.xlu0 %1615
    %v1618 = vmul.f32 %v1612, %v1616
    %1620 = vrot.lane.b32.xlu0 %v1618, 64
    %v1621 = vpop.permute.xlu0 %1620
    %v1623 = vadd.f32 %v1595, %v1621
    %v1624 = vtanh.pop %v1623
    %v1625 = vsub.f32 1.0, %v1612
    %1627 = vrot.lane.b32.xlu0 %v1624, 96
    %v1628 = vpop.permute.xlu0 %1627
    %v1630 = vmul.f32 %v1625, %v1628
    %v1631 = vmul.f32 %v1612, %v1411
    %v1632 = vadd.f32 %v1630, %v1631
    %1634 = vrot.lane.b32.xlu0 %v1632, 96
    %v1635 = vpop.permute.xlu0 %1634
    %s1637 = scalar_lea.vmem [#allocation13], 40
    %1638 = vst.msk [vmem:[%s1637] sm:$0xff] %vm306, %v1635
    %v1640 = vsel %vm306, %v1525, %v1632
    %v1642 = vsel %vm307, %v1640, 0
    %1644 = vmatprep.subr.mxu0 %v267
    %1645 = vmatpush1.msra.mxu0 %v266
    %1646 = vmatprep.subr.mxu0 %v269
    %1647 = vmatpush1.msra.mxu0 %v268
    %1648 = vmatprep.subr.mxu0 %v271
    %1649 = vmatpush1.msra.mxu0 %v270
    %1650 = vmatprep.subr.mxu0 %v273
    %1651 = vmatpush1.msra.mxu0 %v272
    %1652 = vmatprep.subr.mxu0 %v275
    %1653 = vmatpush1.msra.mxu0 %v274
    %1654 = vmatprep.subr.mxu0 %v277
    %1655 = vmatpush1.msra.mxu0 %v276
    %1656 = vmatprep.subr.mxu0 %v279
    %1657 = vmatpush1.msra.mxu0 %v278
    %1658 = vmatprep.subr.mxu0 %v281
    %1659 = vmatpush1.msra.mxu0 %v280
    %1660 = vmatprep.subr.mxu0 0.0
    %1661 = vmatpush1.msra.mxu0 0.0
    %1662 = vmatprep.subr.mxu0 0.0
    %1663 = vmatpush1.msra.mxu0 0.0
    %1664 = vmatprep.subr.mxu0 0.0
    %1665 = vmatpush1.msra.mxu0 0.0
    %1666 = vmatprep.subr.mxu0 0.0
    %1667 = vmatpush1.msra.mxu0 0.0
    %1668 = vmatprep.subr.mxu0 0.0
    %1669 = vmatpush1.msra.mxu0 0.0
    %1670 = vmatprep.subr.mxu0 0.0
    %1671 = vmatpush1.msra.mxu0 0.0
    %1672 = vmatprep.subr.mxu0 0.0
    %1673 = vmatpush1.msra.mxu0 0.0
    %1674 = vmatprep.subr.mxu0 0.0
    %1675 = vmatpush1.msra.mxu0 0.0
    %1676 = vmatprep.subr.mxu0 0.0
    %1677 = vmatpush1.msra.mxu0 0.0
    %1678 = vmatprep.subr.mxu0 0.0
    %1679 = vmatpush1.msra.mxu0 0.0
    %1680 = vmatprep.subr.mxu0 0.0
    %1681 = vmatpush1.msra.mxu0 0.0
    %1682 = vmatprep.subr.mxu0 0.0
    %1683 = vmatpush1.msra.mxu0 0.0
    %1684 = vmatprep.subr.mxu0 0.0
    %1685 = vmatpush1.msra.mxu0 0.0
    %1686 = vmatprep.subr.mxu0 0.0
    %1687 = vmatpush1.msra.mxu0 0.0
    %1688 = vmatprep.subr.mxu0 0.0
    %1689 = vmatpush1.msra.mxu0 0.0
    %1690 = vmatprep.subr.mxu0 0.0
    %1691 = vmatpush1.msra.mxu0 0.0
    %1692 = vmatprep.subr.mxu0 0.0
    %1693 = vmatpush1.msra.mxu0 0.0
    %1694 = vmatprep.subr.mxu0 0.0
    %1695 = vmatpush1.msra.mxu0 0.0
    %1696 = vmatprep.subr.mxu0 0.0
    %1697 = vmatpush1.msra.mxu0 0.0
    %1698 = vmatprep.subr.mxu0 0.0
    %1699 = vmatpush1.msra.mxu0 0.0
    %1700 = vmatprep.subr.mxu0 0.0
    %1701 = vmatpush1.msra.mxu0 0.0
    %1702 = vmatprep.subr.mxu0 0.0
    %1703 = vmatpush1.msra.mxu0 0.0
    %1704 = vmatprep.subr.mxu0 0.0
    %1705 = vmatpush1.msra.mxu0 0.0
    %1706 = vmatprep.subr.mxu0 0.0
    %1707 = vmatpush1.msra.mxu0 0.0
    %1708 = vmatprep.mubr.f32.mxu0 0.0
    %1709 = vmatmul.mubr.f32.gmra.mrb[0].mxu0 %v1642
    %v1710 = vpop.f32.mrb[0].mxu0
    %v1711 = vadd.f32 0.0, %v1710
    %v1712 = vpop.f32.mrb[0].mxu0
    %v1713 = vadd.f32 0.0, %v1712
    %1714 = vdwg.mxu0
    %s1715 = scalar_lea.vmem [#allocation3], 48
    %v1716 = vld [vmem:[%s1715] sm:$0xff]
    %v1717 = vadd.f32 %v1716, %v1711
    %v1718 = vxor.u32 %v1717, 2147483648
    %v1719 = vmul.f32 %v1718, 1.442695
    %v1720 = vpow.pop %v1719
    %v1721 = vadd.f32 %v1720, 1.0
    %v1722 = vrcp.pop %v1721
    %v1723 = vmul.f32 1.0, %v1722
    %v1724 = vadd.f32 %v1711, %v391
    %1726 = vrot.lane.b32.xlu0 %v1724, 64
    %v1727 = vpop.permute.xlu0 %1726
    %v1729 = vmul.f32 %v1723, %v1727
    %1731 = vrot.lane.b32.xlu0 %v1729, 64
    %v1732 = vpop.permute.xlu0 %1731
    %v1734 = vadd.f32 %v1716, %v1732
    %v1735 = vtanh.pop %v1734
    %v1736 = vsub.f32 1.0, %v1723
    %1738 = vrot.lane.b32.xlu0 %v1735, 96
    %v1739 = vpop.permute.xlu0 %1738
    %v1741 = vmul.f32 %v1736, %v1739
    %v1742 = vmul.f32 %v1723, %v1522
    %v1743 = vadd.f32 %v1741, %v1742
    %1745 = vrot.lane.b32.xlu0 %v1743, 96
    %v1746 = vpop.permute.xlu0 %1745
    %v1747 = vsel %vm306, %v1746, 0
    %1749 = vmatprep.subr.mxu0 0.0
    %1750 = vmatpush1.msra.mxu0 %v282
    %1751 = vmatprep.subr.mxu0 0.0
    %1752 = vmatpush1.msra.mxu0 %v283
    %1753 = vmatprep.subr.mxu0 0.0
    %1754 = vmatpush1.msra.mxu0 %v284
    %1755 = vmatprep.subr.mxu0 0.0
    %1756 = vmatpush1.msra.mxu0 %v285
    %1757 = vmatprep.subr.mxu0 0.0
    %1758 = vmatpush1.msra.mxu0 0.0
    %1759 = vmatprep.subr.mxu0 0.0
    %1760 = vmatpush1.msra.mxu0 0.0
    %1761 = vmatprep.subr.mxu0 0.0
    %1762 = vmatpush1.msra.mxu0 0.0
    %1763 = vmatprep.subr.mxu0 0.0
    %1764 = vmatpush1.msra.mxu0 0.0
    %1765 = vmatprep.subr.mxu0 0.0
    %1766 = vmatpush1.msra.mxu0 0.0
    %1767 = vmatprep.subr.mxu0 0.0
    %1768 = vmatpush1.msra.mxu0 0.0
    %1769 = vmatprep.subr.mxu0 0.0
    %1770 = vmatpush1.msra.mxu0 0.0
    %1771 = vmatprep.subr.mxu0 0.0
    %1772 = vmatpush1.msra.mxu0 0.0
    %1773 = vmatprep.subr.mxu0 0.0
    %1774 = vmatpush1.msra.mxu0 0.0
    %1775 = vmatprep.subr.mxu0 0.0
    %1776 = vmatpush1.msra.mxu0 0.0
    %1777 = vmatprep.subr.mxu0 0.0
    %1778 = vmatpush1.msra.mxu0 0.0
    %1779 = vmatprep.subr.mxu0 0.0
    %1780 = vmatpush1.msra.mxu0 0.0
    %1781 = vmatprep.subr.mxu0 0.0
    %1782 = vmatpush1.msra.mxu0 0.0
    %1783 = vmatprep.subr.mxu0 0.0
    %1784 = vmatpush1.msra.mxu0 0.0
    %1785 = vmatprep.subr.mxu0 0.0
    %1786 = vmatpush1.msra.mxu0 0.0
    %1787 = vmatprep.subr.mxu0 0.0
    %1788 = vmatpush1.msra.mxu0 0.0
    %1789 = vmatprep.subr.mxu0 0.0
    %1790 = vmatpush1.msra.mxu0 0.0
    %1791 = vmatprep.subr.mxu0 0.0
    %1792 = vmatpush1.msra.mxu0 0.0
    %1793 = vmatprep.subr.mxu0 0.0
    %1794 = vmatpush1.msra.mxu0 0.0
    %1795 = vmatprep.subr.mxu0 0.0
    %1796 = vmatpush1.msra.mxu0 0.0
    %1797 = vmatprep.subr.mxu0 0.0
    %1798 = vmatpush1.msra.mxu0 0.0
    %1799 = vmatprep.subr.mxu0 0.0
    %1800 = vmatpush1.msra.mxu0 0.0
    %1801 = vmatprep.subr.mxu0 0.0
    %1802 = vmatpush1.msra.mxu0 0.0
    %1803 = vmatprep.subr.mxu0 0.0
    %1804 = vmatpush1.msra.mxu0 0.0
    %1805 = vmatprep.subr.mxu0 0.0
    %1806 = vmatpush1.msra.mxu0 0.0
    %1807 = vmatprep.subr.mxu0 0.0
    %1808 = vmatpush1.msra.mxu0 0.0
    %1809 = vmatprep.subr.mxu0 0.0
    %1810 = vmatpush1.msra.mxu0 0.0
    %1811 = vmatprep.subr.mxu0 0.0
    %1812 = vmatpush1.msra.mxu0 0.0
    %1813 = vmatprep.mubr.f32.mxu0 0.0
    %1814 = vmatmul.mubr.f32.gmra.mrb[0].mxu0 %v1747
    %v1815 = vpop.f32.mrb[0].mxu0
    %v1816 = vadd.f32 %v291, %v1815
    %v1817 = vpop.f32.mrb[0].mxu0
    %1818 = vdwg.mxu0
    %1821 = vrot.lane.b32.xlu0 %v1711, 32
    %v1822 = vpop.permute.xlu0 %1821
    %1823 = vrot.lane.b32.xlu0 %v1713, 32
    %v1824 = vpop.permute.xlu0 %1823
    %v1825 = vsel %vm306, %v1822, %v1824
    %v1827 = vadd.f32 %v1816, %v1825
    %v1828 = vxor.u32 %v1827, 2147483648
    %v1829 = vmul.f32 %v1828, 1.442695
    %v1830 = vpow.pop %v1829
    %v1831 = vadd.f32 %v1830, 1.0
    %v1832 = vrcp.pop %v1831
    %v1833 = vmul.f32 1.0, %v1832
    %v1834 = vadd.f32 %v1713, %v507
    %1836 = vrot.lane.b32.xlu0 %v1834, 96
    %v1837 = vpop.permute.xlu0 %1836
    %v1839 = vmul.f32 %v1833, %v1837
    %1841 = vrot.lane.b32.xlu0 %v1839, 64
    %v1842 = vpop.permute.xlu0 %1841
    %v1844 = vadd.f32 %v1816, %v1842
    %v1845 = vtanh.pop %v1844
    %v1846 = vsub.f32 1.0, %v1833
    %1848 = vrot.lane.b32.xlu0 %v1845, 96
    %v1849 = vpop.permute.xlu0 %1848
    %v1851 = vmul.f32 %v1846, %v1849
    %v1852 = vmul.f32 %v1833, %v1632
    %v1853 = vadd.f32 %v1851, %v1852
    %1855 = vrot.lane.b32.xlu0 %v1853, 96
    %v1856 = vpop.permute.xlu0 %1855
    %s1858 = scalar_lea.vmem [#allocation13], 48
    %1859 = vst.msk [vmem:[%s1858] sm:$0xff] %vm306, %v1856
    %v1861 = vsel %vm306, %v1746, %v1853
    %v1863 = vsel %vm307, %v1861, 0
    %1865 = vmatprep.subr.mxu0 %v267
    %1866 = vmatpush1.msra.mxu0 %v266
    %1867 = vmatprep.subr.mxu0 %v269
    %1868 = vmatpush1.msra.mxu0 %v268
    %1869 = vmatprep.subr.mxu0 %v271
    %1870 = vmatpush1.msra.mxu0 %v270
    %1871 = vmatprep.subr.mxu0 %v273
    %1872 = vmatpush1.msra.mxu0 %v272
    %1873 = vmatprep.subr.mxu0 %v275
    %1874 = vmatpush1.msra.mxu0 %v274
    %1875 = vmatprep.subr.mxu0 %v277
    %1876 = vmatpush1.msra.mxu0 %v276
    %1877 = vmatprep.subr.mxu0 %v279
    %1878 = vmatpush1.msra.mxu0 %v278
    %1879 = vmatprep.subr.mxu0 %v281
    %1880 = vmatpush1.msra.mxu0 %v280
    %1881 = vmatprep.subr.mxu0 0.0
    %1882 = vmatpush1.msra.mxu0 0.0
    %1883 = vmatprep.subr.mxu0 0.0
    %1884 = vmatpush1.msra.mxu0 0.0
    %1885 = vmatprep.subr.mxu0 0.0
    %1886 = vmatpush1.msra.mxu0 0.0
    %1887 = vmatprep.subr.mxu0 0.0
    %1888 = vmatpush1.msra.mxu0 0.0
    %1889 = vmatprep.subr.mxu0 0.0
    %1890 = vmatpush1.msra.mxu0 0.0
    %1891 = vmatprep.subr.mxu0 0.0
    %1892 = vmatpush1.msra.mxu0 0.0
    %1893 = vmatprep.subr.mxu0 0.0
    %1894 = vmatpush1.msra.mxu0 0.0
    %1895 = vmatprep.subr.mxu0 0.0
    %1896 = vmatpush1.msra.mxu0 0.0
    %1897 = vmatprep.subr.mxu0 0.0
    %1898 = vmatpush1.msra.mxu0 0.0
    %1899 = vmatprep.subr.mxu0 0.0
    %1900 = vmatpush1.msra.mxu0 0.0
    %1901 = vmatprep.subr.mxu0 0.0
    %1902 = vmatpush1.msra.mxu0 0.0
    %1903 = vmatprep.subr.mxu0 0.0
    %1904 = vmatpush1.msra.mxu0 0.0
    %1905 = vmatprep.subr.mxu0 0.0
    %1906 = vmatpush1.msra.mxu0 0.0
    %1907 = vmatprep.subr.mxu0 0.0
    %1908 = vmatpush1.msra.mxu0 0.0
    %1909 = vmatprep.subr.mxu0 0.0
    %1910 = vmatpush1.msra.mxu0 0.0
    %1911 = vmatprep.subr.mxu0 0.0
    %1912 = vmatpush1.msra.mxu0 0.0
    %1913 = vmatprep.subr.mxu0 0.0
    %1914 = vmatpush1.msra.mxu0 0.0
    %1915 = vmatprep.subr.mxu0 0.0
    %1916 = vmatpush1.msra.mxu0 0.0
    %1917 = vmatprep.subr.mxu0 0.0
    %1918 = vmatpush1.msra.mxu0 0.0
    %1919 = vmatprep.subr.mxu0 0.0
    %1920 = vmatpush1.msra.mxu0 0.0
    %1921 = vmatprep.subr.mxu0 0.0
    %1922 = vmatpush1.msra.mxu0 0.0
    %1923 = vmatprep.subr.mxu0 0.0
    %1924 = vmatpush1.msra.mxu0 0.0
    %1925 = vmatprep.subr.mxu0 0.0
    %1926 = vmatpush1.msra.mxu0 0.0
    %1927 = vmatprep.subr.mxu0 0.0
    %1928 = vmatpush1.msra.mxu0 0.0
    %1929 = vmatprep.mubr.f32.mxu0 0.0
    %1930 = vmatmul.mubr.f32.gmra.mrb[0].mxu0 %v1863
    %v1931 = vpop.f32.mrb[0].mxu0
    %v1932 = vadd.f32 0.0, %v1931
    %v1933 = vpop.f32.mrb[0].mxu0
    %v1934 = vadd.f32 0.0, %v1933
    %1935 = vdwg.mxu0
    %s1936 = scalar_lea.vmem [#allocation3], 56
    %v1937 = vld [vmem:[%s1936] sm:$0xff]
    %v1938 = vadd.f32 %v1937, %v1932
    %v1939 = vxor.u32 %v1938, 2147483648
    %v1940 = vmul.f32 %v1939, 1.442695
    %v1941 = vpow.pop %v1940
    %v1942 = vadd.f32 %v1941, 1.0
    %v1943 = vrcp.pop %v1942
    %v1944 = vmul.f32 1.0, %v1943
    %v1945 = vadd.f32 %v1932, %v391
    %1947 = vrot.lane.b32.xlu0 %v1945, 64
    %v1948 = vpop.permute.xlu0 %1947
    %v1950 = vmul.f32 %v1944, %v1948
    %1952 = vrot.lane.b32.xlu0 %v1950, 64
    %v1953 = vpop.permute.xlu0 %1952
    %v1955 = vadd.f32 %v1937, %v1953
    %v1956 = vtanh.pop %v1955
    %v1957 = vsub.f32 1.0, %v1944
    %1959 = vrot.lane.b32.xlu0 %v1956, 96
    %v1960 = vpop.permute.xlu0 %1959
    %v1962 = vmul.f32 %v1957, %v1960
    %v1963 = vmul.f32 %v1944, %v1743
    %v1964 = vadd.f32 %v1962, %v1963
    %1966 = vrot.lane.b32.xlu0 %v1964, 96
    %v1967 = vpop.permute.xlu0 %1966
    %v1968 = vsel %vm306, %v1967, 0
    %1970 = vmatprep.subr.mxu0 0.0
    %1971 = vmatpush1.msra.mxu0 %v282
    %1972 = vmatprep.subr.mxu0 0.0
    %1973 = vmatpush1.msra.mxu0 %v283
    %1974 = vmatprep.subr.mxu0 0.0
    %1975 = vmatpush1.msra.mxu0 %v284
    %1976 = vmatprep.subr.mxu0 0.0
    %1977 = vmatpush1.msra.mxu0 %v285
    %1978 = vmatprep.subr.mxu0 0.0
    %1979 = vmatpush1.msra.mxu0 0.0
    %1980 = vmatprep.subr.mxu0 0.0
    %1981 = vmatpush1.msra.mxu0 0.0
    %1982 = vmatprep.subr.mxu0 0.0
    %1983 = vmatpush1.msra.mxu0 0.0
    %1984 = vmatprep.subr.mxu0 0.0
    %1985 = vmatpush1.msra.mxu0 0.0
    %1986 = vmatprep.subr.mxu0 0.0
    %1987 = vmatpush1.msra.mxu0 0.0
    %1988 = vmatprep.subr.mxu0 0.0
    %1989 = vmatpush1.msra.mxu0 0.0
    %1990 = vmatprep.subr.mxu0 0.0
    %1991 = vmatpush1.msra.mxu0 0.0
    %1992 = vmatprep.subr.mxu0 0.0
    %1993 = vmatpush1.msra.mxu0 0.0
    %1994 = vmatprep.subr.mxu0 0.0
    %1995 = vmatpush1.msra.mxu0 0.0
    %1996 = vmatprep.subr.mxu0 0.0
    %1997 = vmatpush1.msra.mxu0 0.0
    %1998 = vmatprep.subr.mxu0 0.0
    %1999 = vmatpush1.msra.mxu0 0.0
    %2000 = vmatprep.subr.mxu0 0.0
    %2001 = vmatpush1.msra.mxu0 0.0
    %2002 = vmatprep.subr.mxu0 0.0
    %2003 = vmatpush1.msra.mxu0 0.0
    %2004 = vmatprep.subr.mxu0 0.0
    %2005 = vmatpush1.msra.mxu0 0.0
    %2006 = vmatprep.subr.mxu0 0.0
    %2007 = vmatpush1.msra.mxu0 0.0
    %2008 = vmatprep.subr.mxu0 0.0
    %2009 = vmatpush1.msra.mxu0 0.0
    %2010 = vmatprep.subr.mxu0 0.0
    %2011 = vmatpush1.msra.mxu0 0.0
    %2012 = vmatprep.subr.mxu0 0.0
    %2013 = vmatpush1.msra.mxu0 0.0
    %2014 = vmatprep.subr.mxu0 0.0
    %2015 = vmatpush1.msra.mxu0 0.0
    %2016 = vmatprep.subr.mxu0 0.0
    %2017 = vmatpush1.msra.mxu0 0.0
    %2018 = vmatprep.subr.mxu0 0.0
    %2019 = vmatpush1.msra.mxu0 0.0
    %2020 = vmatprep.subr.mxu0 0.0
    %2021 = vmatpush1.msra.mxu0 0.0
    %2022 = vmatprep.subr.mxu0 0.0
    %2023 = vmatpush1.msra.mxu0 0.0
    %2024 = vmatprep.subr.mxu0 0.0
    %2025 = vmatpush1.msra.mxu0 0.0
    %2026 = vmatprep.subr.mxu0 0.0
    %2027 = vmatpush1.msra.mxu0 0.0
    %2028 = vmatprep.subr.mxu0 0.0
    %2029 = vmatpush1.msra.mxu0 0.0
    %2030 = vmatprep.subr.mxu0 0.0
    %2031 = vmatpush1.msra.mxu0 0.0
    %2032 = vmatprep.subr.mxu0 0.0
    %2033 = vmatpush1.msra.mxu0 0.0
    %2034 = vmatprep.mubr.f32.mxu0 0.0
    %2035 = vmatmul.mubr.f32.gmra.mrb[0].mxu0 %v1968
    %v2036 = vpop.f32.mrb[0].mxu0
    %v2037 = vadd.f32 %v291, %v2036
    %v2038 = vpop.f32.mrb[0].mxu0
    %2039 = vdwg.mxu0
    %2042 = vrot.lane.b32.xlu0 %v1932, 32
    %v2043 = vpop.permute.xlu0 %2042
    %2044 = vrot.lane.b32.xlu0 %v1934, 32
    %v2045 = vpop.permute.xlu0 %2044
    %v2046 = vsel %vm306, %v2043, %v2045
    %v2048 = vadd.f32 %v2037, %v2046
    %v2049 = vxor.u32 %v2048, 2147483648
    %v2050 = vmul.f32 %v2049, 1.442695
    %v2051 = vpow.pop %v2050
    %v2052 = vadd.f32 %v2051, 1.0
    %v2053 = vrcp.pop %v2052
    %v2054 = vmul.f32 1.0, %v2053
    %v2055 = vadd.f32 %v1934, %v507
    %2057 = vrot.lane.b32.xlu0 %v2055, 96
    %v2058 = vpop.permute.xlu0 %2057
    %v2060 = vmul.f32 %v2054, %v2058
    %2062 = vrot.lane.b32.xlu0 %v2060, 64
    %v2063 = vpop.permute.xlu0 %2062
    %v2065 = vadd.f32 %v2037, %v2063
    %v2066 = vtanh.pop %v2065
    %v2067 = vsub.f32 1.0, %v2054
    %2069 = vrot.lane.b32.xlu0 %v2066, 96
    %v2070 = vpop.permute.xlu0 %2069
    %v2072 = vmul.f32 %v2067, %v2070
    %v2073 = vmul.f32 %v2054, %v1853
    %v2074 = vadd.f32 %v2072, %v2073
    %2076 = vrot.lane.b32.xlu0 %v2074, 96
    %v2077 = vpop.permute.xlu0 %2076
    %s2079 = scalar_lea.vmem [#allocation13], 56
    %2080 = vst.msk [vmem:[%s2079] sm:$0xff] %vm306, %v2077
    %2082 = vst.msk [vmem:[#allocation2] sm:$0xff] %vm306, %v1967
    %vm2083 = vcmask 523520
    %2084 = vst.msk [vmem:[#allocation2] sm:$0xff] %vm2083, %v2074
    // Predicated region
    $region62: #{tpu_custom_call.1} parent=1 // pred_check
      _
    $region63: #{tpu_custom_call.1} parent=1 // pred_check_branch
      %2086 = sbr.rel (0) target = $region65
    $region64: #{tpu_custom_call.1} parent=1 // pred_region
      %s2088 = ssub.s32 1024, 1024
      %2089 = vsyncadd [#allocation6], %s2088
      %s2090 = sshll.u32 [#allocation13], 4
      %s2091 = int_to_ptr.vmem [resolvable:$true] %s2090
      %2096 = dma.vmem_to_hbm [thread:$0]  %s2091, 1024, %s9, [#allocation6], 128, 128, 8
    $region65: #{tpu_custom_call.1} parent=1 // pred_fallthru
      _
    // Predicated region
    $region66: #{tpu_custom_call.1} parent=1 // pred_check
      _
    $region67: #{tpu_custom_call.1} parent=1 // pred_check_branch
      %2098 = sbr.rel (0) target = $region69
    $region68: #{tpu_custom_call.1} parent=1 // pred_region
      %2099 = dma.done [#allocation6], 1024
    $region69: #{tpu_custom_call.1} parent=1 // pred_fallthru
      _
    %2100 = vsyncpa [#allocation5], 1
    %2101 = vsyncpa [#allocation8], 1
    %2102 = vsyncpa [#allocation11], 1
    %2103 = vsyncpa [#allocation6], 1

</llo_original>
